<compile_context>
chip_gen: v5e
topology: v5e:2x2
jax: 0.10.0
libtpu: 0.0.40
codegen_flags: <defaults>
</compile_context>

<pallas_src>
import jax
import jax.numpy as jnp
from jax.experimental import pallas as pl
from jax.experimental.pallas import tpu as pltpu

TILE_TYPES = 32
EMB = 16          # embedding dim for tiles (vision branch input channels)
C1 = 32           # conv1 output channels (3x3)
C2 = 64           # conv2 output channels (1x1)
C_PAD = 128       # lane-aligned padded channel width for conv intermediates
GCN_H1 = 128      # GCN hidden 1
GCN_H2 = 256      # GCN hidden 2
FEAT = 512        # output feature dim of both branches


# ---------------------------------------------------------------------------
# Fused Pallas kernel: both branches in one step.
# ---------------------------------------------------------------------------
def _make_fused_kernel(B, HW, N):
    bf16 = jnp.bfloat16
    f32 = jnp.float32

    def kernel(patch_ref, adj_ref, node_ref,
               vw1_ref, vb1_ref, vw2_ref, vb2_ref, vfc_w_ref, vfc_b_ref,
               tw1_ref, tw2_ref, tfc_w_ref, tfc_b_ref,
               vout_ref, tout_ref):
        # ----------------- vision branch (conv-as-matmul) -----------------
        # (B*HW, 9*EMB) x (9*EMB, C_PAD) -> f32 accumulate
        h1 = jnp.dot(patch_ref[...], vw1_ref[...],
                     preferred_element_type=f32) + vb1_ref[...]
        h1 = jnp.maximum(h1, 0.0)                                # (B*HW, C_PAD)
        h2 = jnp.dot(h1.astype(bf16), vw2_ref[...],
                     preferred_element_type=f32) + vb2_ref[...]
        h2 = jnp.maximum(h2, 0.0)                                # (B*HW, C_PAD)
        # batched global average pool: one reduction, no per-batch slicing
        pooled_v = jnp.mean(h2.reshape(B, HW, C_PAD), axis=1)    # (B, C_PAD)
        vfeat = jnp.dot(pooled_v.astype(bf16), vfc_w_ref[...],
                        preferred_element_type=f32) + vfc_b_ref[...]
        vout_ref[...] = jnp.maximum(vfeat, 0.0)                  # (B, FEAT)

        # ----------------- topo branch (batched 2-layer GCN) --------------
        adjm = adj_ref[...]                                      # (B, N, N) bf16
        nodes = node_ref[...]                                    # (B, N, T) bf16
        T = nodes.shape[-1]

        # reassociated GCN layer 1: adj @ (x @ W1) == (adj @ x) @ W1
        xw = jnp.dot(nodes.reshape(B * N, T), tw1_ref[...],
                     preferred_element_type=f32)                 # (B*N, H1)
        h = jnp.einsum('bnm,bmh->bnh', adjm,
                       xw.reshape(B, N, GCN_H1).astype(bf16),
                       preferred_element_type=f32)
        h = jnp.maximum(h, 0.0)                                  # (B, N, H1)

        # GCN layer 2
        hw = jnp.dot(h.reshape(B * N, GCN_H1).astype(bf16), tw2_ref[...],
                     preferred_element_type=f32)                 # (B*N, H2)
        g = jnp.einsum('bnm,bmh->bnh', adjm,
                       hw.reshape(B, N, GCN_H2).astype(bf16),
                       preferred_element_type=f32)
        g = jnp.maximum(g, 0.0)                                  # (B, N, H2)

        pooled_t = jnp.mean(g, axis=1)                           # (B, H2)
        tfeat = jnp.dot(pooled_t.astype(bf16), tfc_w_ref[...],
                        preferred_element_type=f32) + tfc_b_ref[...]
        tout_ref[...] = jnp.maximum(tfeat, 0.0)                  # (B, FEAT)

    return kernel


# ---------------------------------------------------------------------------
# Wrapper
# ---------------------------------------------------------------------------
def im2col_3x3(xpad):
    """(B, H+2, W+2, C) zero-padded NHWC -> (B, H*W, 9*C) patches."""
    B, Hp, Wp, C = xpad.shape
    H, W = Hp - 2, Wp - 2
    cols = []
    for dy in range(3):
        for dx in range(3):
            cols.append(xpad[:, dy:dy + H, dx:dx + W, :])
    patches = jnp.concatenate(cols, axis=-1)
    return patches.reshape(B, H * W, 9 * C)


def minamo_forward(tile_map, node_x, adj, p):
    """MinamoModel.forward: returns (vision_feat, topo_feat), each (B, FEAT)."""
    B, H, W = tile_map.shape
    N = node_x.shape[1]
    HW = H * W
    bf16 = jnp.bfloat16

    # Plain-JAX glue: embedding gather + zero pad + im2col rearrangement.
    x = p["emb"][tile_map]                                        # (B, H, W, EMB)
    xpad = jnp.pad(x, ((0, 0), (1, 1), (1, 1), (0, 0)))
    patches = im2col_3x3(xpad).reshape(B * HW, 9 * EMB).astype(bf16)

    # Pre-cast activations to bf16 in the wrapper (half the DMA bytes).
    adj_b = adj.astype(bf16)
    node_b = node_x.astype(bf16)

    # Zero-pad narrow conv channel dims to 128 lanes (mathematically identical:
    # padded weights/biases are zero, ReLU(0)=0, padded FC input rows are zero).
    vw1 = jnp.pad(p["vconv1_w2d"], ((0, 0), (0, C_PAD - C1))).astype(bf16)
    vb1 = jnp.pad(p["vconv1_b"], ((0, 0), (0, C_PAD - C1)))
    vw2 = jnp.pad(p["vconv2_w"], ((0, C_PAD - C1), (0, C_PAD - C2))).astype(bf16)
    vb2 = jnp.pad(p["vconv2_b"], ((0, 0), (0, C_PAD - C2)))
    vfc_w = jnp.pad(p["vfc_w"], ((0, C_PAD - C2), (0, 0))).astype(bf16)
    vfc_b = p["vfc_b"]
    tw1 = p["tw1"].astype(bf16)
    tw2 = p["tw2"].astype(bf16)
    tfc_w = p["tfc_w"].astype(bf16)
    tfc_b = p["tfc_b"]

    kernel = _make_fused_kernel(B, HW, N)

    n_inputs = 13
    vmem_spec = pl.BlockSpec(memory_space=pltpu.MemorySpace.VMEM)

    vision_feat, topo_feat = pl.pallas_call(
        kernel,
        out_shape=(jax.ShapeDtypeStruct((B, FEAT), jnp.float32),
                   jax.ShapeDtypeStruct((B, FEAT), jnp.float32)),
        in_specs=[vmem_spec] * n_inputs,
        out_specs=(vmem_spec, vmem_spec),
    )(patches, adj_b, node_b,
      vw1, vb1, vw2, vb2, vfc_w, vfc_b,
      tw1, tw2, tfc_w, tfc_b)

    return vision_feat, topo_feat


# ---------------------------------------------------------------------------
# Params / glue
# ---------------------------------------------------------------------------
def normalize_adj(adj_raw):
    n = adj_raw.shape[-1]
    a = jnp.maximum(adj_raw, jnp.swapaxes(adj_raw, -1, -2)) \
        + jnp.eye(n, dtype=adj_raw.dtype)[None]
    d = a.sum(-1)
    dinv = 1.0 / jnp.sqrt(d)
    return a * dinv[..., :, None] * dinv[..., None, :]


def init_params(key):
    ks = jax.random.split(key, 11)

    def w(k, shape, fan_in):
        return jax.random.normal(k, shape, jnp.float32) / jnp.sqrt(float(fan_in))

    p = {}
    p["emb"] = w(ks[0], (TILE_TYPES, EMB), 1.0)
    conv1 = w(ks[1], (3, 3, EMB, C1), 9 * EMB)          # (ky, kx, Cin, Cout)
    p["vconv1_w2d"] = conv1.reshape(9 * EMB, C1)        # matches im2col order
    p["vconv1_b"] = w(ks[2], (1, C1), 100.0)
    p["vconv2_w"] = w(ks[3], (C1, C2), C1)
    p["vconv2_b"] = w(ks[4], (1, C2), 100.0)
    p["vfc_w"] = w(ks[5], (C2, FEAT), C2)
    p["vfc_b"] = w(ks[6], (1, FEAT), 100.0)
    p["tw1"] = w(ks[7], (TILE_TYPES, GCN_H1), TILE_TYPES)
    p["tw2"] = w(ks[8], (GCN_H1, GCN_H2), GCN_H1)
    p["tfc_w"] = w(ks[9], (GCN_H2, FEAT), GCN_H2)
    p["tfc_b"] = w(ks[10], (1, FEAT), 100.0)
    return p


# ---------------------------------------------------------------------------
# Pure-JAX reference (same math, f32) for a correctness check
# ---------------------------------------------------------------------------
def reference_forward(tile_map, node_x, adj, p):
    x = p["emb"][tile_map]
    xpad = jnp.pad(x, ((0, 0), (1, 1), (1, 1), (0, 0)))
    patches = im2col_3x3(xpad)
    h1 = jax.nn.relu(patches @ p["vconv1_w2d"] + p["vconv1_b"][None])
    h2 = jax.nn.relu(h1 @ p["vconv2_w"] + p["vconv2_b"][None])
    vpool = h2.mean(axis=1)
    vfeat = jax.nn.relu(vpool @ p["vfc_w"] + p["vfc_b"])

    h = jax.nn.relu(jnp.einsum("bnm,bmt->bnt", adj, node_x) @ p["tw1"])
    h = jax.nn.relu(jnp.einsum("bnm,bmt->bnt", adj, h) @ p["tw2"])
    tpool = h.mean(axis=1)
    tfeat = jax.nn.relu(tpool @ p["tfc_w"] + p["tfc_b"])
    return vfeat, tfeat


# ---------------------------------------------------------------------------
if __name__ == "__main__":
    key = jax.random.PRNGKey(0)
    k_param, k_map, k_node, k_adj = jax.random.split(key, 4)

    B, H, W, N = 2, 16, 16, 8
    params = init_params(k_param)

    tile_map = jax.random.randint(k_map, (B, H, W), 0, TILE_TYPES, dtype=jnp.int32)
    node_x = jax.random.normal(k_node, (B, N, TILE_TYPES), jnp.float32)
    adj = normalize_adj((jax.random.uniform(k_adj, (B, N, N)) > 0.5).astype(jnp.float32))

    fwd = jax.jit(minamo_forward)
    vision_feat, topo_feat = fwd(tile_map, node_x, adj, params)
    jax.block_until_ready((vision_feat, topo_feat))

    ref_v, ref_t = reference_forward(tile_map, node_x, adj, params)
    ok = (jnp.allclose(vision_feat, ref_v, rtol=3e-2, atol=3e-2)
          and jnp.allclose(topo_feat, ref_t, rtol=3e-2, atol=3e-2))
    if not bool(ok):
        raise AssertionError("Pallas output does not match pure-JAX reference")

    print("KERNEL_OK")
</pallas_src>

<mosaic_0001>
module attributes {stable_mosaic.version = 11 : i64} {
  func.func @kernel(%arg0: memref<512x144xbf16, #tpu.memory_space<vmem>>, %arg1: memref<2x8x8xbf16, #tpu.memory_space<vmem>>, %arg2: memref<2x8x32xbf16, #tpu.memory_space<vmem>>, %arg3: memref<144x128xbf16, #tpu.memory_space<vmem>>, %arg4: memref<1x128xf32, #tpu.memory_space<vmem>>, %arg5: memref<128x128xbf16, #tpu.memory_space<vmem>>, %arg6: memref<1x128xf32, #tpu.memory_space<vmem>>, %arg7: memref<128x512xbf16, #tpu.memory_space<vmem>>, %arg8: memref<1x512xf32, #tpu.memory_space<vmem>>, %arg9: memref<32x128xbf16, #tpu.memory_space<vmem>>, %arg10: memref<128x256xbf16, #tpu.memory_space<vmem>>, %arg11: memref<256x512xbf16, #tpu.memory_space<vmem>>, %arg12: memref<1x512xf32, #tpu.memory_space<vmem>>, %arg13: memref<2x512xf32, #tpu.memory_space<vmem>>, %arg14: memref<2x512xf32, #tpu.memory_space<vmem>>) attributes {dimension_semantics = [], scalar_prefetch = 0 : i64, scratch_operands = 0 : i64, tpu.core_type = #tpu.core_type<tc>} {
    %c0 = arith.constant 0 : index
    %c0_0 = arith.constant 0 : index
    %0 = vector.load %arg0[%c0, %c0_0] : memref<512x144xbf16, #tpu.memory_space<vmem>>, vector<512x144xbf16>
    %c0_1 = arith.constant 0 : index
    %c0_2 = arith.constant 0 : index
    %1 = vector.load %arg3[%c0_1, %c0_2] : memref<144x128xbf16, #tpu.memory_space<vmem>>, vector<144x128xbf16>
    %cst = arith.constant dense<0.000000e+00> : vector<512x128xf32>
    %2 = tpu.matmul %0, %1, %cst {dimension_numbers = #tpu.dot_dimension_numbers<[1], [0], [0], [1], [0, 0, 1, 1], [], []>} : vector<512x144xbf16>, vector<144x128xbf16>, vector<512x128xf32> -> vector<512x128xf32>
    %c0_3 = arith.constant 0 : index
    %c0_4 = arith.constant 0 : index
    %3 = vector.load %arg4[%c0_3, %c0_4] : memref<1x128xf32, #tpu.memory_space<vmem>>, vector<1x128xf32>
    %4 = vector.broadcast %3 : vector<1x128xf32> to vector<512x128xf32>
    %5 = arith.addf %2, %4 : vector<512x128xf32>
    %cst_5 = arith.constant 0.000000e+00 : f32
    %6 = vector.broadcast %cst_5 : f32 to vector<512x128xf32>
    %7 = arith.maximumf %5, %6 : vector<512x128xf32>
    %8 = arith.truncf %7 : vector<512x128xf32> to vector<512x128xbf16>
    %c0_6 = arith.constant 0 : index
    %c0_7 = arith.constant 0 : index
    %9 = vector.load %arg5[%c0_6, %c0_7] : memref<128x128xbf16, #tpu.memory_space<vmem>>, vector<128x128xbf16>
    %cst_8 = arith.constant dense<0.000000e+00> : vector<512x128xf32>
    %10 = tpu.matmul %8, %9, %cst_8 {dimension_numbers = #tpu.dot_dimension_numbers<[1], [0], [0], [1], [0, 0, 1, 1], [], []>} : vector<512x128xbf16>, vector<128x128xbf16>, vector<512x128xf32> -> vector<512x128xf32>
    %c0_9 = arith.constant 0 : index
    %c0_10 = arith.constant 0 : index
    %11 = vector.load %arg6[%c0_9, %c0_10] : memref<1x128xf32, #tpu.memory_space<vmem>>, vector<1x128xf32>
    %12 = vector.broadcast %11 : vector<1x128xf32> to vector<512x128xf32>
    %13 = arith.addf %10, %12 : vector<512x128xf32>
    %cst_11 = arith.constant 0.000000e+00 : f32
    %14 = vector.broadcast %cst_11 : f32 to vector<512x128xf32>
    %15 = arith.maximumf %13, %14 : vector<512x128xf32>
    %16 = vector.shape_cast %15 : vector<512x128xf32> to vector<2x256x128xf32>
    %cst_12 = arith.constant dense<0.000000e+00> : vector<2x128xf32>
    %17 = vector.multi_reduction <add>, %16, %cst_12 [1] : vector<2x256x128xf32> to vector<2x128xf32>
    %cst_13 = arith.constant 2.560000e+02 : f32
    %18 = vector.broadcast %cst_13 : f32 to vector<2x128xf32>
    %19 = arith.divf %17, %18 : vector<2x128xf32>
    %20 = arith.truncf %19 : vector<2x128xf32> to vector<2x128xbf16>
    %c0_14 = arith.constant 0 : index
    %c0_15 = arith.constant 0 : index
    %21 = vector.load %arg7[%c0_14, %c0_15] : memref<128x512xbf16, #tpu.memory_space<vmem>>, vector<128x512xbf16>
    %cst_16 = arith.constant dense<0.000000e+00> : vector<2x512xf32>
    %22 = tpu.matmul %20, %21, %cst_16 {dimension_numbers = #tpu.dot_dimension_numbers<[1], [0], [0], [1], [0, 0, 1, 1], [], []>} : vector<2x128xbf16>, vector<128x512xbf16>, vector<2x512xf32> -> vector<2x512xf32>
    %c0_17 = arith.constant 0 : index
    %c0_18 = arith.constant 0 : index
    %23 = vector.load %arg8[%c0_17, %c0_18] : memref<1x512xf32, #tpu.memory_space<vmem>>, vector<1x512xf32>
    %24 = vector.broadcast %23 : vector<1x512xf32> to vector<2x512xf32>
    %25 = arith.addf %22, %24 : vector<2x512xf32>
    %cst_19 = arith.constant 0.000000e+00 : f32
    %26 = vector.broadcast %cst_19 : f32 to vector<2x512xf32>
    %27 = arith.maximumf %25, %26 : vector<2x512xf32>
    %c0_20 = arith.constant 0 : index
    %c0_21 = arith.constant 0 : index
    %28 = vector.load %arg13[%c0_20, %c0_21] : memref<2x512xf32, #tpu.memory_space<vmem>>, vector<2x512xf32>
    tpu.vector_store %arg13[%c0_20, %c0_21], %27 {strides = array<i32>} : memref<2x512xf32, #tpu.memory_space<vmem>>, vector<2x512xf32>,
    %c0_22 = arith.constant 0 : index
    %c0_23 = arith.constant 0 : index
    %c0_24 = arith.constant 0 : index
    %29 = vector.load %arg1[%c0_22, %c0_23, %c0_24] : memref<2x8x8xbf16, #tpu.memory_space<vmem>>, vector<2x8x8xbf16>
    %c0_25 = arith.constant 0 : index
    %c0_26 = arith.constant 0 : index
    %c0_27 = arith.constant 0 : index
    %30 = vector.load %arg2[%c0_25, %c0_26, %c0_27] : memref<2x8x32xbf16, #tpu.memory_space<vmem>>, vector<2x8x32xbf16>
    %31 = vector.shape_cast %30 : vector<2x8x32xbf16> to vector<16x32xbf16>
    %c0_28 = arith.constant 0 : index
    %c0_29 = arith.constant 0 : index
    %32 = vector.load %arg9[%c0_28, %c0_29] : memref<32x128xbf16, #tpu.memory_space<vmem>>, vector<32x128xbf16>
    %cst_30 = arith.constant dense<0.000000e+00> : vector<16x128xf32>
    %33 = tpu.matmul %31, %32, %cst_30 {dimension_numbers = #tpu.dot_dimension_numbers<[1], [0], [0], [1], [0, 0, 1, 1], [], []>} : vector<16x32xbf16>, vector<32x128xbf16>, vector<16x128xf32> -> vector<16x128xf32>
    %34 = vector.shape_cast %33 : vector<16x128xf32> to vector<2x8x128xf32>
    %35 = arith.truncf %34 : vector<2x8x128xf32> to vector<2x8x128xbf16>
    "tpu.trace_start"() <{level = 10 : i32, message = "bnm,bmh->bnh"}> : () -> ()
    %cst_31 = arith.constant dense<0.000000e+00> : vector<2x8x128xf32>
    %36 = tpu.matmul %29, %35, %cst_31 {dimension_numbers = #tpu.dot_dimension_numbers<[2], [1], [1], [2], [0, 0, 0, 1, 1, 2], [0], [0]>} : vector<2x8x8xbf16>, vector<2x8x128xbf16>, vector<2x8x128xf32> -> vector<2x8x128xf32>
    "tpu.trace_stop"() : () -> ()
    %cst_32 = arith.constant 0.000000e+00 : f32
    %37 = vector.broadcast %cst_32 : f32 to vector<2x8x128xf32>
    %38 = arith.maximumf %36, %37 : vector<2x8x128xf32>
    %39 = vector.shape_cast %38 : vector<2x8x128xf32> to vector<16x128xf32>
    %40 = arith.truncf %39 : vector<16x128xf32> to vector<16x128xbf16>
    %c0_33 = arith.constant 0 : index
    %c0_34 = arith.constant 0 : index
    %41 = vector.load %arg10[%c0_33, %c0_34] : memref<128x256xbf16, #tpu.memory_space<vmem>>, vector<128x256xbf16>
    %cst_35 = arith.constant dense<0.000000e+00> : vector<16x256xf32>
    %42 = tpu.matmul %40, %41, %cst_35 {dimension_numbers = #tpu.dot_dimension_numbers<[1], [0], [0], [1], [0, 0, 1, 1], [], []>} : vector<16x128xbf16>, vector<128x256xbf16>, vector<16x256xf32> -> vector<16x256xf32>
    %43 = vector.shape_cast %42 : vector<16x256xf32> to vector<2x8x256xf32>
    %44 = arith.truncf %43 : vector<2x8x256xf32> to vector<2x8x256xbf16>
    "tpu.trace_start"() <{level = 10 : i32, message = "bnm,bmh->bnh"}> : () -> ()
    %cst_36 = arith.constant dense<0.000000e+00> : vector<2x8x256xf32>
    %45 = tpu.matmul %29, %44, %cst_36 {dimension_numbers = #tpu.dot_dimension_numbers<[2], [1], [1], [2], [0, 0, 0, 1, 1, 2], [0], [0]>} : vector<2x8x8xbf16>, vector<2x8x256xbf16>, vector<2x8x256xf32> -> vector<2x8x256xf32>
    "tpu.trace_stop"() : () -> ()
    %cst_37 = arith.constant 0.000000e+00 : f32
    %46 = vector.broadcast %cst_37 : f32 to vector<2x8x256xf32>
    %47 = arith.maximumf %45, %46 : vector<2x8x256xf32>
    %cst_38 = arith.constant dense<0.000000e+00> : vector<2x256xf32>
    %48 = vector.multi_reduction <add>, %47, %cst_38 [1] : vector<2x8x256xf32> to vector<2x256xf32>
    %cst_39 = arith.constant 8.000000e+00 : f32
    %49 = vector.broadcast %cst_39 : f32 to vector<2x256xf32>
    %50 = arith.divf %48, %49 : vector<2x256xf32>
    %51 = arith.truncf %50 : vector<2x256xf32> to vector<2x256xbf16>
    %c0_40 = arith.constant 0 : index
    %c0_41 = arith.constant 0 : index
    %52 = vector.load %arg11[%c0_40, %c0_41] : memref<256x512xbf16, #tpu.memory_space<vmem>>, vector<256x512xbf16>
    %cst_42 = arith.constant dense<0.000000e+00> : vector<2x512xf32>
    %53 = tpu.matmul %51, %52, %cst_42 {dimension_numbers = #tpu.dot_dimension_numbers<[1], [0], [0], [1], [0, 0, 1, 1], [], []>} : vector<2x256xbf16>, vector<256x512xbf16>, vector<2x512xf32> -> vector<2x512xf32>
    %c0_43 = arith.constant 0 : index
    %c0_44 = arith.constant 0 : index
    %54 = vector.load %arg12[%c0_43, %c0_44] : memref<1x512xf32, #tpu.memory_space<vmem>>, vector<1x512xf32>
    %55 = vector.broadcast %54 : vector<1x512xf32> to vector<2x512xf32>
    %56 = arith.addf %53, %55 : vector<2x512xf32>
    %cst_45 = arith.constant 0.000000e+00 : f32
    %57 = vector.broadcast %cst_45 : f32 to vector<2x512xf32>
    %58 = arith.maximumf %56, %57 : vector<2x512xf32>
    %c0_46 = arith.constant 0 : index
    %c0_47 = arith.constant 0 : index
    %59 = vector.load %arg14[%c0_46, %c0_47] : memref<2x512xf32, #tpu.memory_space<vmem>>, vector<2x512xf32>
    tpu.vector_store %arg14[%c0_46, %c0_47], %58 {strides = array<i32>} : memref<2x512xf32, #tpu.memory_space<vmem>>, vector<2x512xf32>,
    return
  }
}

</mosaic_0001>

<llo_original>
// kernel: minamo_forward.1
$region0: #{minamo_forward.1}
  #allocation0 [shape = 'u32[]', space=smem, size = 0x4, offset = 0x4, fixed_abs, tag = 'smem constant byte address 0x4 - core index']
  #allocation1 [shape = 'u32[72,128]{1,0:T(1,128)}', space=vmem, size = 0x9000, scoped, tag = 'internal scratch']
  %s0 = inlined_call_operand.vmem [shape: bf16[512,144], index: 0, kind: input, shape index: {}]
  %s1 = inlined_call_operand.vmem [shape: bf16[2,8,8], index: 1, kind: input, shape index: {}]
  %s2 = inlined_call_operand.vmem [shape: bf16[2,8,32], index: 2, kind: input, shape index: {}]
  %s3 = inlined_call_operand.vmem [shape: bf16[144,128], index: 3, kind: input, shape index: {}]
  %s4 = inlined_call_operand.vmem [shape: f32[1,128], index: 4, kind: input, shape index: {}]
  %s5 = inlined_call_operand.vmem [shape: bf16[128,128], index: 5, kind: input, shape index: {}]
  %s6 = inlined_call_operand.vmem [shape: f32[1,128], index: 6, kind: input, shape index: {}]
  %s7 = inlined_call_operand.vmem [shape: bf16[128,512], index: 7, kind: input, shape index: {}]
  %s8 = inlined_call_operand.vmem [shape: f32[1,512], index: 8, kind: input, shape index: {}]
  %s9 = inlined_call_operand.vmem [shape: bf16[32,128], index: 9, kind: input, shape index: {}]
  %s10 = inlined_call_operand.vmem [shape: bf16[128,256], index: 10, kind: input, shape index: {}]
  %s11 = inlined_call_operand.vmem [shape: bf16[256,512], index: 11, kind: input, shape index: {}]
  %s12 = inlined_call_operand.vmem [shape: f32[1,512], index: 12, kind: input, shape index: {}]
  %s13 = inlined_call_operand.hbm [shape: f32[2,512], index: 13, kind: output, shape index: {0}]
  %s14 = inlined_call_operand.hbm [shape: f32[2,512], index: 14, kind: output, shape index: {1}]
  %15 = xla_tuple %s13, %s14
  %s16 = sld [smem:[#allocation0]]
  $region70: #{minamo_forward.1} parent=0
    _
  %s18 = ssub.s32 1, %s16
  %s19 = scalar_select 0, %s18, %s16
  $region1: #{minamo_forward.1} parent=0
    #allocation2 [shape = 'u8[4096]{0}', space=vmem, size = 0x1000, scoped, tag = 'output window, operand 0, single buffered']
    #allocation3 [shape = 's32[1]{0}', space=sflag, size = 0x4, scoped, tag = 'scoped memory for minamo_forward.1']
    #allocation4 [shape = 'u8[4096]{0}', space=vmem, size = 0x1000, scoped, tag = 'output window, operand 1, single buffered']
    #allocation5 [shape = 's32[1]{0}', space=sflag, size = 0x4, scoped, tag = 'scoped memory for minamo_forward.1']
    %20 = vsyncpa [#allocation3], 0
    %21 = vsyncpa [#allocation5], 0
    // Predicated region
    $region2: #{minamo_forward.1} parent=1 // pred_check
      _
    $region3: #{minamo_forward.1} parent=1 // pred_check_branch
      %23 = sbr.rel (0) target = $region5
    $region4: #{minamo_forward.1} parent=1 // pred_region
      _
    $region5: #{minamo_forward.1} parent=1 // pred_fallthru
      _
    // Predicated region
    $region6: #{minamo_forward.1} parent=1 // pred_check
      _
    $region7: #{minamo_forward.1} parent=1 // pred_check_branch
      %25 = sbr.rel (0) target = $region9
    $region8: #{minamo_forward.1} parent=1 // pred_region
      _
    $region9: #{minamo_forward.1} parent=1 // pred_fallthru
      _
    // Predicated region
    $region10: #{minamo_forward.1} parent=1 // pred_check
      _
    $region11: #{minamo_forward.1} parent=1 // pred_check_branch
      %27 = sbr.rel (0) target = $region13
    $region12: #{minamo_forward.1} parent=1 // pred_region
      _
    $region13: #{minamo_forward.1} parent=1 // pred_fallthru
      _
    // Predicated region
    $region14: #{minamo_forward.1} parent=1 // pred_check
      _
    $region15: #{minamo_forward.1} parent=1 // pred_check_branch
      %29 = sbr.rel (0) target = $region17
    $region16: #{minamo_forward.1} parent=1 // pred_region
      _
    $region17: #{minamo_forward.1} parent=1 // pred_fallthru
      _
    // Predicated region
    $region18: #{minamo_forward.1} parent=1 // pred_check
      _
    $region19: #{minamo_forward.1} parent=1 // pred_check_branch
      %31 = sbr.rel (0) target = $region21
    $region20: #{minamo_forward.1} parent=1 // pred_region
      _
    $region21: #{minamo_forward.1} parent=1 // pred_fallthru
      _
    // Predicated region
    $region22: #{minamo_forward.1} parent=1 // pred_check
      _
    $region23: #{minamo_forward.1} parent=1 // pred_check_branch
      %33 = sbr.rel (0) target = $region25
    $region24: #{minamo_forward.1} parent=1 // pred_region
      _
    $region25: #{minamo_forward.1} parent=1 // pred_fallthru
      _
    // Predicated region
    $region26: #{minamo_forward.1} parent=1 // pred_check
      _
    $region27: #{minamo_forward.1} parent=1 // pred_check_branch
      %35 = sbr.rel (0) target = $region29
    $region28: #{minamo_forward.1} parent=1 // pred_region
      _
    $region29: #{minamo_forward.1} parent=1 // pred_fallthru
      _
    // Predicated region
    $region30: #{minamo_forward.1} parent=1 // pred_check
      _
    $region31: #{minamo_forward.1} parent=1 // pred_check_branch
      %37 = sbr.rel (0) target = $region33
    $region32: #{minamo_forward.1} parent=1 // pred_region
      _
    $region33: #{minamo_forward.1} parent=1 // pred_fallthru
      _
    // Predicated region
    $region34: #{minamo_forward.1} parent=1 // pred_check
      _
    $region35: #{minamo_forward.1} parent=1 // pred_check_branch
      %39 = sbr.rel (0) target = $region37
    $region36: #{minamo_forward.1} parent=1 // pred_region
      _
    $region37: #{minamo_forward.1} parent=1 // pred_fallthru
      _
    // Predicated region
    $region38: #{minamo_forward.1} parent=1 // pred_check
      _
    $region39: #{minamo_forward.1} parent=1 // pred_check_branch
      %41 = sbr.rel (0) target = $region41
    $region40: #{minamo_forward.1} parent=1 // pred_region
      _
    $region41: #{minamo_forward.1} parent=1 // pred_fallthru
      _
    // Predicated region
    $region42: #{minamo_forward.1} parent=1 // pred_check
      _
    $region43: #{minamo_forward.1} parent=1 // pred_check_branch
      %43 = sbr.rel (0) target = $region45
    $region44: #{minamo_forward.1} parent=1 // pred_region
      _
    $region45: #{minamo_forward.1} parent=1 // pred_fallthru
      _
    // Predicated region
    $region46: #{minamo_forward.1} parent=1 // pred_check
      _
    $region47: #{minamo_forward.1} parent=1 // pred_check_branch
      %45 = sbr.rel (0) target = $region49
    $region48: #{minamo_forward.1} parent=1 // pred_region
      _
    $region49: #{minamo_forward.1} parent=1 // pred_fallthru
      _
    // Predicated region
    $region50: #{minamo_forward.1} parent=1 // pred_check
      _
    $region51: #{minamo_forward.1} parent=1 // pred_check_branch
      %47 = sbr.rel (0) target = $region53
    $region52: #{minamo_forward.1} parent=1 // pred_region
      _
    $region53: #{minamo_forward.1} parent=1 // pred_fallthru
      _
    %v49 = vld [vmem:[%s0] sm:$0xff]
    %v50 = vld [vmem:[%s0 + $0x8] sm:$0xff]
    %v51 = vld [vmem:[%s0 + $0x10] sm:$0xff]
    %v52 = vld [vmem:[%s0 + $0x18] sm:$0xff]
    %v53 = vld [vmem:[%s0 + $0x20] sm:$0xff]
    %v54 = vld [vmem:[%s0 + $0x28] sm:$0xff]
    %v55 = vld [vmem:[%s0 + $0x30] sm:$0xff]
    %v56 = vld [vmem:[%s0 + $0x38] sm:$0xff]
    %v57 = vld [vmem:[%s0 + $0x40] sm:$0xff]
    %v58 = vld [vmem:[%s0 + $0x48] sm:$0xff]
    %v59 = vld [vmem:[%s0 + $0x50] sm:$0xff]
    %v60 = vld [vmem:[%s0 + $0x58] sm:$0xff]
    %v61 = vld [vmem:[%s0 + $0x60] sm:$0xff]
    %v62 = vld [vmem:[%s0 + $0x68] sm:$0xff]
    %v63 = vld [vmem:[%s0 + $0x70] sm:$0xff]
    %v64 = vld [vmem:[%s0 + $0x78] sm:$0xff]
    %v65 = vld [vmem:[%s0 + $0x80] sm:$0xff]
    %v66 = vld [vmem:[%s0 + $0x88] sm:$0xff]
    %v67 = vld [vmem:[%s0 + $0x90] sm:$0xff]
    %v68 = vld [vmem:[%s0 + $0x98] sm:$0xff]
    %v69 = vld [vmem:[%s0 + $0xa0] sm:$0xff]
    %v70 = vld [vmem:[%s0 + $0xa8] sm:$0xff]
    %v71 = vld [vmem:[%s0 + $0xb0] sm:$0xff]
    %v72 = vld [vmem:[%s0 + $0xb8] sm:$0xff]
    %v73 = vld [vmem:[%s0 + $0xc0] sm:$0xff]
    %v74 = vld [vmem:[%s0 + $0xc8] sm:$0xff]
    %v75 = vld [vmem:[%s0 + $0xd0] sm:$0xff]
    %v76 = vld [vmem:[%s0 + $0xd8] sm:$0xff]
    %v77 = vld [vmem:[%s0 + $0xe0] sm:$0xff]
    %v78 = vld [vmem:[%s0 + $0xe8] sm:$0xff]
    %v79 = vld [vmem:[%s0 + $0xf0] sm:$0xff]
    %v80 = vld [vmem:[%s0 + $0xf8] sm:$0xff]
    %v81 = vld [vmem:[%s0 + $0x100] sm:$0xff]
    %v82 = vld [vmem:[%s0 + $0x108] sm:$0xff]
    %v83 = vld [vmem:[%s0 + $0x110] sm:$0xff]
    %v84 = vld [vmem:[%s0 + $0x118] sm:$0xff]
    %v85 = vld [vmem:[%s0 + $0x120] sm:$0xff]
    %v86 = vld [vmem:[%s0 + $0x128] sm:$0xff]
    %v87 = vld [vmem:[%s0 + $0x130] sm:$0xff]
    %v88 = vld [vmem:[%s0 + $0x138] sm:$0xff]
    %v89 = vld [vmem:[%s0 + $0x140] sm:$0xff]
    %v90 = vld [vmem:[%s0 + $0x148] sm:$0xff]
    %v91 = vld [vmem:[%s0 + $0x150] sm:$0xff]
    %v92 = vld [vmem:[%s0 + $0x158] sm:$0xff]
    %v93 = vld [vmem:[%s0 + $0x160] sm:$0xff]
    %v94 = vld [vmem:[%s0 + $0x168] sm:$0xff]
    %v95 = vld [vmem:[%s0 + $0x170] sm:$0xff]
    %v96 = vld [vmem:[%s0 + $0x178] sm:$0xff]
    %v97 = vld [vmem:[%s0 + $0x180] sm:$0xff]
    %v98 = vld [vmem:[%s0 + $0x188] sm:$0xff]
    %v99 = vld [vmem:[%s0 + $0x190] sm:$0xff]
    %v100 = vld [vmem:[%s0 + $0x198] sm:$0xff]
    %v101 = vld [vmem:[%s0 + $0x1a0] sm:$0xff]
    %v102 = vld [vmem:[%s0 + $0x1a8] sm:$0xff]
    %v103 = vld [vmem:[%s0 + $0x1b0] sm:$0xff]
    %v104 = vld [vmem:[%s0 + $0x1b8] sm:$0xff]
    %v105 = vld [vmem:[%s0 + $0x1c0] sm:$0xff]
    %v106 = vld [vmem:[%s0 + $0x1c8] sm:$0xff]
    %v107 = vld [vmem:[%s0 + $0x1d0] sm:$0xff]
    %v108 = vld [vmem:[%s0 + $0x1d8] sm:$0xff]
    %v109 = vld [vmem:[%s0 + $0x1e0] sm:$0xff]
    %v110 = vld [vmem:[%s0 + $0x1e8] sm:$0xff]
    %v111 = vld [vmem:[%s0 + $0x1f0] sm:$0xff]
    %v112 = vld [vmem:[%s0 + $0x1f8] sm:$0xff]
    %v113 = vld [vmem:[%s3] sm:$0xf]
    %v114 = vld [vmem:[%s3 + $0x4] sm:$0xf]
    %v115 = vld [vmem:[%s3 + $0x8] sm:$0xf]
    %v116 = vld [vmem:[%s3 + $0xc] sm:$0xf]
    %v117 = vld [vmem:[%s3 + $0x10] sm:$0xf]
    %v118 = vld [vmem:[%s3 + $0x14] sm:$0xf]
    %v119 = vld [vmem:[%s3 + $0x18] sm:$0xf]
    %v120 = vld [vmem:[%s3 + $0x1c] sm:$0xf]
    %v121 = vld [vmem:[%s3 + $0x20] sm:$0xf]
    %v122 = vld [vmem:[%s3 + $0x24] sm:$0xf]
    %v123 = vld [vmem:[%s3 + $0x28] sm:$0xf]
    %v124 = vld [vmem:[%s3 + $0x2c] sm:$0xf]
    %v125 = vld [vmem:[%s3 + $0x30] sm:$0xf]
    %v126 = vld [vmem:[%s3 + $0x34] sm:$0xf]
    %v127 = vld [vmem:[%s3 + $0x38] sm:$0xf]
    %v128 = vld [vmem:[%s3 + $0x3c] sm:$0xf]
    %v129 = vld [vmem:[%s3 + $0x40] sm:$0xf]
    %v130 = vld [vmem:[%s3 + $0x44] sm:$0xf]
    %v131 = vld [vmem:[%s4] sm:$0x1]
    %v133 = vperm.slane %v131, 0
    %v199 = vunpack.c.l.b16 %v49
    %v200 = vunpack.c.h.b16 %v49
    %v201 = vunpack.c.l.b16 %v50
    %v202 = vunpack.c.h.b16 %v50
    %v203 = vunpack.c.l.b16 %v51
    %v204 = vunpack.c.h.b16 %v51
    %v205 = vunpack.c.l.b16 %v52
    %v206 = vunpack.c.h.b16 %v52
    %v207 = vunpack.c.l.b16 %v53
    %v208 = vunpack.c.h.b16 %v53
    %v209 = vunpack.c.l.b16 %v54
    %v210 = vunpack.c.h.b16 %v54
    %v211 = vunpack.c.l.b16 %v55
    %v212 = vunpack.c.h.b16 %v55
    %v213 = vunpack.c.l.b16 %v56
    %v214 = vunpack.c.h.b16 %v56
    %v215 = vunpack.c.l.b16 %v57
    %v216 = vunpack.c.h.b16 %v57
    %v217 = vunpack.c.l.b16 %v58
    %v218 = vunpack.c.h.b16 %v58
    %v219 = vunpack.c.l.b16 %v59
    %v220 = vunpack.c.h.b16 %v59
    %v221 = vunpack.c.l.b16 %v60
    %v222 = vunpack.c.h.b16 %v60
    %v223 = vunpack.c.l.b16 %v61
    %v224 = vunpack.c.h.b16 %v61
    %v225 = vunpack.c.l.b16 %v62
    %v226 = vunpack.c.h.b16 %v62
    %v227 = vunpack.c.l.b16 %v63
    %v228 = vunpack.c.h.b16 %v63
    %v229 = vunpack.c.l.b16 %v64
    %v230 = vunpack.c.h.b16 %v64
    %v231 = vunpack.c.l.b16 %v65
    %v232 = vunpack.c.h.b16 %v65
    %v233 = vunpack.c.l.b16 %v66
    %v234 = vunpack.c.h.b16 %v66
    %v235 = vunpack.c.l.b16 %v67
    %v236 = vunpack.c.h.b16 %v67
    %v237 = vunpack.c.l.b16 %v68
    %v238 = vunpack.c.h.b16 %v68
    %v239 = vunpack.c.l.b16 %v69
    %v240 = vunpack.c.h.b16 %v69
    %v241 = vunpack.c.l.b16 %v70
    %v242 = vunpack.c.h.b16 %v70
    %v243 = vunpack.c.l.b16 %v71
    %v244 = vunpack.c.h.b16 %v71
    %v245 = vunpack.c.l.b16 %v72
    %v246 = vunpack.c.h.b16 %v72
    %v247 = vunpack.c.l.b16 %v73
    %v248 = vunpack.c.h.b16 %v73
    %v249 = vunpack.c.l.b16 %v74
    %v250 = vunpack.c.h.b16 %v74
    %v251 = vunpack.c.l.b16 %v75
    %v252 = vunpack.c.h.b16 %v75
    %v253 = vunpack.c.l.b16 %v76
    %v254 = vunpack.c.h.b16 %v76
    %v255 = vunpack.c.l.b16 %v77
    %v256 = vunpack.c.h.b16 %v77
    %v257 = vunpack.c.l.b16 %v78
    %v258 = vunpack.c.h.b16 %v78
    %v259 = vunpack.c.l.b16 %v79
    %v260 = vunpack.c.h.b16 %v79
    %v261 = vunpack.c.l.b16 %v80
    %v262 = vunpack.c.h.b16 %v80
    %v263 = vunpack.c.l.b16 %v81
    %v264 = vunpack.c.h.b16 %v81
    %v265 = vunpack.c.l.b16 %v82
    %v266 = vunpack.c.h.b16 %v82
    %v267 = vunpack.c.l.b16 %v83
    %v268 = vunpack.c.h.b16 %v83
    %v269 = vunpack.c.l.b16 %v84
    %v270 = vunpack.c.h.b16 %v84
    %v271 = vunpack.c.l.b16 %v85
    %v272 = vunpack.c.h.b16 %v85
    %v273 = vunpack.c.l.b16 %v86
    %v274 = vunpack.c.h.b16 %v86
    %v275 = vunpack.c.l.b16 %v87
    %v276 = vunpack.c.h.b16 %v87
    %v277 = vunpack.c.l.b16 %v88
    %v278 = vunpack.c.h.b16 %v88
    %v279 = vunpack.c.l.b16 %v89
    %v280 = vunpack.c.h.b16 %v89
    %v281 = vunpack.c.l.b16 %v90
    %v282 = vunpack.c.h.b16 %v90
    %v283 = vunpack.c.l.b16 %v91
    %v284 = vunpack.c.h.b16 %v91
    %v285 = vunpack.c.l.b16 %v92
    %v286 = vunpack.c.h.b16 %v92
    %v287 = vunpack.c.l.b16 %v93
    %v288 = vunpack.c.h.b16 %v93
    %v289 = vunpack.c.l.b16 %v94
    %v290 = vunpack.c.h.b16 %v94
    %v291 = vunpack.c.l.b16 %v95
    %v292 = vunpack.c.h.b16 %v95
    %v293 = vunpack.c.l.b16 %v96
    %v294 = vunpack.c.h.b16 %v96
    %v295 = vunpack.c.l.b16 %v97
    %v296 = vunpack.c.h.b16 %v97
    %v297 = vunpack.c.l.b16 %v98
    %v298 = vunpack.c.h.b16 %v98
    %v299 = vunpack.c.l.b16 %v99
    %v300 = vunpack.c.h.b16 %v99
    %v301 = vunpack.c.l.b16 %v100
    %v302 = vunpack.c.h.b16 %v100
    %v303 = vunpack.c.l.b16 %v101
    %v304 = vunpack.c.h.b16 %v101
    %v305 = vunpack.c.l.b16 %v102
    %v306 = vunpack.c.h.b16 %v102
    %v307 = vunpack.c.l.b16 %v103
    %v308 = vunpack.c.h.b16 %v103
    %v309 = vunpack.c.l.b16 %v104
    %v310 = vunpack.c.h.b16 %v104
    %v311 = vunpack.c.l.b16 %v105
    %v312 = vunpack.c.h.b16 %v105
    %v313 = vunpack.c.l.b16 %v106
    %v314 = vunpack.c.h.b16 %v106
    %v315 = vunpack.c.l.b16 %v107
    %v316 = vunpack.c.h.b16 %v107
    %v317 = vunpack.c.l.b16 %v108
    %v318 = vunpack.c.h.b16 %v108
    %v319 = vunpack.c.l.b16 %v109
    %v320 = vunpack.c.h.b16 %v109
    %v321 = vunpack.c.l.b16 %v110
    %v322 = vunpack.c.h.b16 %v110
    %v323 = vunpack.c.l.b16 %v111
    %v324 = vunpack.c.h.b16 %v111
    %v325 = vunpack.c.l.b16 %v112
    %v326 = vunpack.c.h.b16 %v112
    %v327 = vpack.c.b16 %v201, %v199
    %v328 = vpack.c.b16 %v202, %v200
    %v329 = vpack.c.b16 %v205, %v203
    %v330 = vpack.c.b16 %v206, %v204
    %v331 = vpack.c.b16 %v209, %v207
    %v332 = vpack.c.b16 %v210, %v208
    %v333 = vpack.c.b16 %v213, %v211
    %v334 = vpack.c.b16 %v214, %v212
    %v335 = vpack.c.b16 %v217, %v215
    %v336 = vpack.c.b16 %v218, %v216
    %v337 = vpack.c.b16 %v221, %v219
    %v338 = vpack.c.b16 %v222, %v220
    %v339 = vpack.c.b16 %v225, %v223
    %v340 = vpack.c.b16 %v226, %v224
    %v341 = vpack.c.b16 %v229, %v227
    %v342 = vpack.c.b16 %v230, %v228
    %v343 = vpack.c.b16 %v233, %v231
    %v344 = vpack.c.b16 %v234, %v232
    %v345 = vpack.c.b16 %v237, %v235
    %v346 = vpack.c.b16 %v238, %v236
    %v347 = vpack.c.b16 %v241, %v239
    %v348 = vpack.c.b16 %v242, %v240
    %v349 = vpack.c.b16 %v245, %v243
    %v350 = vpack.c.b16 %v246, %v244
    %v351 = vpack.c.b16 %v249, %v247
    %v352 = vpack.c.b16 %v250, %v248
    %v353 = vpack.c.b16 %v253, %v251
    %v354 = vpack.c.b16 %v254, %v252
    %v355 = vpack.c.b16 %v257, %v255
    %v356 = vpack.c.b16 %v258, %v256
    %v357 = vpack.c.b16 %v261, %v259
    %v358 = vpack.c.b16 %v262, %v260
    %v359 = vpack.c.b16 %v265, %v263
    %v360 = vpack.c.b16 %v266, %v264
    %v361 = vpack.c.b16 %v269, %v267
    %v362 = vpack.c.b16 %v270, %v268
    %v363 = vpack.c.b16 %v273, %v271
    %v364 = vpack.c.b16 %v274, %v272
    %v365 = vpack.c.b16 %v277, %v275
    %v366 = vpack.c.b16 %v278, %v276
    %v367 = vpack.c.b16 %v281, %v279
    %v368 = vpack.c.b16 %v282, %v280
    %v369 = vpack.c.b16 %v285, %v283
    %v370 = vpack.c.b16 %v286, %v284
    %v371 = vpack.c.b16 %v289, %v287
    %v372 = vpack.c.b16 %v290, %v288
    %v373 = vpack.c.b16 %v293, %v291
    %v374 = vpack.c.b16 %v294, %v292
    %v375 = vpack.c.b16 %v297, %v295
    %v376 = vpack.c.b16 %v298, %v296
    %v377 = vpack.c.b16 %v301, %v299
    %v378 = vpack.c.b16 %v302, %v300
    %v379 = vpack.c.b16 %v305, %v303
    %v380 = vpack.c.b16 %v306, %v304
    %v381 = vpack.c.b16 %v309, %v307
    %v382 = vpack.c.b16 %v310, %v308
    %v383 = vpack.c.b16 %v313, %v311
    %v384 = vpack.c.b16 %v314, %v312
    %v385 = vpack.c.b16 %v317, %v315
    %v386 = vpack.c.b16 %v318, %v316
    %v387 = vpack.c.b16 %v321, %v319
    %v388 = vpack.c.b16 %v322, %v320
    %v389 = vpack.c.b16 %v325, %v323
    %v390 = vpack.c.b16 %v326, %v324
    %v441 = vunpack.c.l.b16 %v113
    %v442 = vunpack.c.l.b16 %v114
    %v443 = vunpack.c.l.b16 %v115
    %v444 = vunpack.c.l.b16 %v116
    %v445 = vunpack.c.l.b16 %v117
    %v446 = vunpack.c.l.b16 %v118
    %v447 = vunpack.c.l.b16 %v119
    %v448 = vunpack.c.l.b16 %v120
    %v449 = vunpack.c.l.b16 %v121
    %v450 = vunpack.c.l.b16 %v122
    %v451 = vunpack.c.l.b16 %v123
    %v452 = vunpack.c.l.b16 %v124
    %v453 = vunpack.c.l.b16 %v125
    %v454 = vunpack.c.l.b16 %v126
    %v455 = vunpack.c.l.b16 %v127
    %v456 = vunpack.c.l.b16 %v128
    %v457 = vunpack.c.l.b16 %v129
    %v458 = vunpack.c.l.b16 %v130
    %v459 = vpack.c.b16 %v442, %v441
    %v460 = vpack.c.b16 %v444, %v443
    %v461 = vpack.c.b16 %v446, %v445
    %v462 = vpack.c.b16 %v448, %v447
    %v463 = vpack.c.b16 %v450, %v449
    %v464 = vpack.c.b16 %v452, %v451
    %v465 = vpack.c.b16 %v454, %v453
    %v466 = vpack.c.b16 %v456, %v455
    %v467 = vpack.c.b16 %v458, %v457
    %vm477 = vcmask 130048
    %v479 = vsel %vm477, %v328, 0
    %v482 = vsel %vm477, %v330, 0
    %v485 = vsel %vm477, %v332, 0
    %v488 = vsel %vm477, %v334, 0
    %v491 = vsel %vm477, %v336, 0
    %v494 = vsel %vm477, %v338, 0
    %v497 = vsel %vm477, %v340, 0
    %v500 = vsel %vm477, %v342, 0
    %v503 = vsel %vm477, %v344, 0
    %v506 = vsel %vm477, %v346, 0
    %v509 = vsel %vm477, %v348, 0
    %v512 = vsel %vm477, %v350, 0
    %v515 = vsel %vm477, %v352, 0
    %v518 = vsel %vm477, %v354, 0
    %v521 = vsel %vm477, %v356, 0
    %v524 = vsel %vm477, %v358, 0
    %v527 = vsel %vm477, %v360, 0
    %v530 = vsel %vm477, %v362, 0
    %v533 = vsel %vm477, %v364, 0
    %v536 = vsel %vm477, %v366, 0
    %v539 = vsel %vm477, %v368, 0
    %v542 = vsel %vm477, %v370, 0
    %v545 = vsel %vm477, %v372, 0
    %v548 = vsel %vm477, %v374, 0
    %v551 = vsel %vm477, %v376, 0
    %v554 = vsel %vm477, %v378, 0
    %v557 = vsel %vm477, %v380, 0
    %v560 = vsel %vm477, %v382, 0
    %v563 = vsel %vm477, %v384, 0
    %v566 = vsel %vm477, %v386, 0
    %v569 = vsel %vm477, %v388, 0
    %v572 = vsel %vm477, %v390, 0
    %574 = vmatpush.bf16.msra.mxu0 %v466
    %575 = vmatpush.bf16.msra.mxu0 %v465
    %576 = vmatpush.bf16.msra.mxu0 %v464
    %577 = vmatpush.bf16.msra.mxu0 %v463
    %578 = vmatpush.bf16.msra.mxu0 %v462
    %579 = vmatpush.bf16.msra.mxu0 %v461
    %580 = vmatpush.bf16.msra.mxu0 %v460
    %581 = vmatpush.bf16.msra.mxu0 %v459
    %582 = vmatmul.bf16.gmra.mxu0 %v327
    %v583 = vpop.f32.mrf.mxu0
    %v584 = vadd.f32 %v133, %v583
    %v585 = vpop.f32.mrf.mxu0
    %v586 = vadd.f32 %v133, %v585
    %587 = vmatmul.bf16.gmra.mxu0 %v329
    %v588 = vpop.f32.mrf.mxu0
    %v589 = vadd.f32 %v133, %v588
    %v590 = vpop.f32.mrf.mxu0
    %v591 = vadd.f32 %v133, %v590
    %592 = vmatmul.bf16.gmra.mxu0 %v331
    %v593 = vpop.f32.mrf.mxu0
    %v594 = vadd.f32 %v133, %v593
    %v595 = vpop.f32.mrf.mxu0
    %v596 = vadd.f32 %v133, %v595
    %597 = vmatmul.bf16.gmra.mxu0 %v333
    %v598 = vpop.f32.mrf.mxu0
    %v599 = vadd.f32 %v133, %v598
    %v600 = vpop.f32.mrf.mxu0
    %v601 = vadd.f32 %v133, %v600
    %602 = vmatmul.bf16.gmra.mxu0 %v335
    %v603 = vpop.f32.mrf.mxu0
    %v604 = vadd.f32 %v133, %v603
    %v605 = vpop.f32.mrf.mxu0
    %v606 = vadd.f32 %v133, %v605
    %607 = vmatmul.bf16.gmra.mxu0 %v337
    %v608 = vpop.f32.mrf.mxu0
    %v609 = vadd.f32 %v133, %v608
    %v610 = vpop.f32.mrf.mxu0
    %v611 = vadd.f32 %v133, %v610
    %612 = vmatmul.bf16.gmra.mxu0 %v339
    %v613 = vpop.f32.mrf.mxu0
    %v614 = vadd.f32 %v133, %v613
    %v615 = vpop.f32.mrf.mxu0
    %v616 = vadd.f32 %v133, %v615
    %617 = vmatmul.bf16.gmra.mxu0 %v341
    %v618 = vpop.f32.mrf.mxu0
    %v619 = vadd.f32 %v133, %v618
    %v620 = vpop.f32.mrf.mxu0
    %v621 = vadd.f32 %v133, %v620
    %622 = vmatmul.bf16.gmra.mxu0 %v343
    %v623 = vpop.f32.mrf.mxu0
    %v624 = vadd.f32 %v133, %v623
    %v625 = vpop.f32.mrf.mxu0
    %v626 = vadd.f32 %v133, %v625
    %627 = vmatmul.bf16.gmra.mxu0 %v345
    %v628 = vpop.f32.mrf.mxu0
    %v629 = vadd.f32 %v133, %v628
    %v630 = vpop.f32.mrf.mxu0
    %v631 = vadd.f32 %v133, %v630
    %632 = vmatmul.bf16.gmra.mxu0 %v347
    %v633 = vpop.f32.mrf.mxu0
    %v634 = vadd.f32 %v133, %v633
    %v635 = vpop.f32.mrf.mxu0
    %v636 = vadd.f32 %v133, %v635
    %637 = vmatmul.bf16.gmra.mxu0 %v349
    %v638 = vpop.f32.mrf.mxu0
    %v639 = vadd.f32 %v133, %v638
    %v640 = vpop.f32.mrf.mxu0
    %v641 = vadd.f32 %v133, %v640
    %642 = vmatmul.bf16.gmra.mxu0 %v351
    %v643 = vpop.f32.mrf.mxu0
    %v644 = vadd.f32 %v133, %v643
    %v645 = vpop.f32.mrf.mxu0
    %v646 = vadd.f32 %v133, %v645
    %647 = vmatmul.bf16.gmra.mxu0 %v353
    %v648 = vpop.f32.mrf.mxu0
    %v649 = vadd.f32 %v133, %v648
    %v650 = vpop.f32.mrf.mxu0
    %v651 = vadd.f32 %v133, %v650
    %652 = vmatmul.bf16.gmra.mxu0 %v355
    %v653 = vpop.f32.mrf.mxu0
    %v654 = vadd.f32 %v133, %v653
    %v655 = vpop.f32.mrf.mxu0
    %v656 = vadd.f32 %v133, %v655
    %657 = vmatmul.bf16.gmra.mxu0 %v357
    %v658 = vpop.f32.mrf.mxu0
    %v659 = vadd.f32 %v133, %v658
    %v660 = vpop.f32.mrf.mxu0
    %v661 = vadd.f32 %v133, %v660
    %662 = vmatmul.bf16.gmra.mxu0 %v359
    %v663 = vpop.f32.mrf.mxu0
    %v664 = vadd.f32 %v133, %v663
    %v665 = vpop.f32.mrf.mxu0
    %v666 = vadd.f32 %v133, %v665
    %667 = vmatmul.bf16.gmra.mxu0 %v361
    %v668 = vpop.f32.mrf.mxu0
    %v669 = vadd.f32 %v133, %v668
    %v670 = vpop.f32.mrf.mxu0
    %v671 = vadd.f32 %v133, %v670
    %672 = vmatmul.bf16.gmra.mxu0 %v363
    %v673 = vpop.f32.mrf.mxu0
    %v674 = vadd.f32 %v133, %v673
    %v675 = vpop.f32.mrf.mxu0
    %v676 = vadd.f32 %v133, %v675
    %677 = vmatmul.bf16.gmra.mxu0 %v365
    %v678 = vpop.f32.mrf.mxu0
    %v679 = vadd.f32 %v133, %v678
    %v680 = vpop.f32.mrf.mxu0
    %v681 = vadd.f32 %v133, %v680
    %682 = vmatmul.bf16.gmra.mxu0 %v367
    %v683 = vpop.f32.mrf.mxu0
    %v684 = vadd.f32 %v133, %v683
    %v685 = vpop.f32.mrf.mxu0
    %v686 = vadd.f32 %v133, %v685
    %687 = vmatmul.bf16.gmra.mxu0 %v369
    %v688 = vpop.f32.mrf.mxu0
    %v689 = vadd.f32 %v133, %v688
    %v690 = vpop.f32.mrf.mxu0
    %v691 = vadd.f32 %v133, %v690
    %692 = vmatmul.bf16.gmra.mxu0 %v371
    %v693 = vpop.f32.mrf.mxu0
    %v694 = vadd.f32 %v133, %v693
    %v695 = vpop.f32.mrf.mxu0
    %v696 = vadd.f32 %v133, %v695
    %697 = vmatmul.bf16.gmra.mxu0 %v373
    %v698 = vpop.f32.mrf.mxu0
    %v699 = vadd.f32 %v133, %v698
    %v700 = vpop.f32.mrf.mxu0
    %v701 = vadd.f32 %v133, %v700
    %702 = vmatmul.bf16.gmra.mxu0 %v375
    %v703 = vpop.f32.mrf.mxu0
    %v704 = vadd.f32 %v133, %v703
    %v705 = vpop.f32.mrf.mxu0
    %v706 = vadd.f32 %v133, %v705
    %707 = vmatmul.bf16.gmra.mxu0 %v377
    %v708 = vpop.f32.mrf.mxu0
    %v709 = vadd.f32 %v133, %v708
    %v710 = vpop.f32.mrf.mxu0
    %v711 = vadd.f32 %v133, %v710
    %712 = vmatmul.bf16.gmra.mxu0 %v379
    %v713 = vpop.f32.mrf.mxu0
    %v714 = vadd.f32 %v133, %v713
    %v715 = vpop.f32.mrf.mxu0
    %v716 = vadd.f32 %v133, %v715
    %717 = vmatmul.bf16.gmra.mxu0 %v381
    %v718 = vpop.f32.mrf.mxu0
    %v719 = vadd.f32 %v133, %v718
    %v720 = vpop.f32.mrf.mxu0
    %v721 = vadd.f32 %v133, %v720
    %722 = vmatmul.bf16.gmra.mxu0 %v383
    %v723 = vpop.f32.mrf.mxu0
    %v724 = vadd.f32 %v133, %v723
    %v725 = vpop.f32.mrf.mxu0
    %v726 = vadd.f32 %v133, %v725
    %727 = vmatmul.bf16.gmra.mxu0 %v385
    %v728 = vpop.f32.mrf.mxu0
    %v729 = vadd.f32 %v133, %v728
    %v730 = vpop.f32.mrf.mxu0
    %v731 = vadd.f32 %v133, %v730
    %732 = vmatmul.bf16.gmra.mxu0 %v387
    %v733 = vpop.f32.mrf.mxu0
    %v734 = vadd.f32 %v133, %v733
    %v735 = vpop.f32.mrf.mxu0
    %v736 = vadd.f32 %v133, %v735
    %737 = vmatmul.bf16.gmra.mxu0 %v389
    %v738 = vpop.f32.mrf.mxu0
    %v739 = vadd.f32 %v133, %v738
    %v740 = vpop.f32.mrf.mxu0
    %v741 = vadd.f32 %v133, %v740
    %742 = vdwg.mxu0
    %743 = vmatpush.bf16.msra.mxu0 0
    %744 = vmatpush.bf16.msra.mxu0 0
    %745 = vmatpush.bf16.msra.mxu0 0
    %746 = vmatpush.bf16.msra.mxu0 0
    %747 = vmatpush.bf16.msra.mxu0 0
    %748 = vmatpush.bf16.msra.mxu0 0
    %749 = vmatpush.bf16.msra.mxu0 0
    %750 = vmatpush.bf16.msra.mxu0 %v467
    %751 = vmatmul.bf16.gmra.mxu0 %v479
    %v752 = vpop.f32.mrf.mxu0
    %v753 = vadd.f32 %v584, %v752
    %v754 = vpop.f32.mrf.mxu0
    %v755 = vadd.f32 %v586, %v754
    %756 = vmatmul.bf16.gmra.mxu0 %v482
    %v757 = vpop.f32.mrf.mxu0
    %v758 = vadd.f32 %v589, %v757
    %v759 = vpop.f32.mrf.mxu0
    %v760 = vadd.f32 %v591, %v759
    %761 = vmatmul.bf16.gmra.mxu0 %v485
    %v762 = vpop.f32.mrf.mxu0
    %v763 = vadd.f32 %v594, %v762
    %v764 = vpop.f32.mrf.mxu0
    %v765 = vadd.f32 %v596, %v764
    %766 = vmatmul.bf16.gmra.mxu0 %v488
    %v767 = vpop.f32.mrf.mxu0
    %v768 = vadd.f32 %v599, %v767
    %v769 = vpop.f32.mrf.mxu0
    %v770 = vadd.f32 %v601, %v769
    %771 = vmatmul.bf16.gmra.mxu0 %v491
    %v772 = vpop.f32.mrf.mxu0
    %v773 = vadd.f32 %v604, %v772
    %v774 = vpop.f32.mrf.mxu0
    %v775 = vadd.f32 %v606, %v774
    %776 = vmatmul.bf16.gmra.mxu0 %v494
    %v777 = vpop.f32.mrf.mxu0
    %v778 = vadd.f32 %v609, %v777
    %v779 = vpop.f32.mrf.mxu0
    %v780 = vadd.f32 %v611, %v779
    %781 = vmatmul.bf16.gmra.mxu0 %v497
    %v782 = vpop.f32.mrf.mxu0
    %v783 = vadd.f32 %v614, %v782
    %v784 = vpop.f32.mrf.mxu0
    %v785 = vadd.f32 %v616, %v784
    %786 = vmatmul.bf16.gmra.mxu0 %v500
    %v787 = vpop.f32.mrf.mxu0
    %v788 = vadd.f32 %v619, %v787
    %v789 = vpop.f32.mrf.mxu0
    %v790 = vadd.f32 %v621, %v789
    %791 = vmatmul.bf16.gmra.mxu0 %v503
    %v792 = vpop.f32.mrf.mxu0
    %v793 = vadd.f32 %v624, %v792
    %v794 = vpop.f32.mrf.mxu0
    %v795 = vadd.f32 %v626, %v794
    %796 = vmatmul.bf16.gmra.mxu0 %v506
    %v797 = vpop.f32.mrf.mxu0
    %v798 = vadd.f32 %v629, %v797
    %v799 = vpop.f32.mrf.mxu0
    %v800 = vadd.f32 %v631, %v799
    %801 = vmatmul.bf16.gmra.mxu0 %v509
    %v802 = vpop.f32.mrf.mxu0
    %v803 = vadd.f32 %v634, %v802
    %v804 = vpop.f32.mrf.mxu0
    %v805 = vadd.f32 %v636, %v804
    %806 = vmatmul.bf16.gmra.mxu0 %v512
    %v807 = vpop.f32.mrf.mxu0
    %v808 = vadd.f32 %v639, %v807
    %v809 = vpop.f32.mrf.mxu0
    %v810 = vadd.f32 %v641, %v809
    %811 = vmatmul.bf16.gmra.mxu0 %v515
    %v812 = vpop.f32.mrf.mxu0
    %v813 = vadd.f32 %v644, %v812
    %v814 = vpop.f32.mrf.mxu0
    %v815 = vadd.f32 %v646, %v814
    %816 = vmatmul.bf16.gmra.mxu0 %v518
    %v817 = vpop.f32.mrf.mxu0
    %v818 = vadd.f32 %v649, %v817
    %v819 = vpop.f32.mrf.mxu0
    %v820 = vadd.f32 %v651, %v819
    %821 = vmatmul.bf16.gmra.mxu0 %v521
    %v822 = vpop.f32.mrf.mxu0
    %v823 = vadd.f32 %v654, %v822
    %v824 = vpop.f32.mrf.mxu0
    %v825 = vadd.f32 %v656, %v824
    %826 = vmatmul.bf16.gmra.mxu0 %v524
    %v827 = vpop.f32.mrf.mxu0
    %v828 = vadd.f32 %v659, %v827
    %v829 = vpop.f32.mrf.mxu0
    %v830 = vadd.f32 %v661, %v829
    %831 = vmatmul.bf16.gmra.mxu0 %v527
    %v832 = vpop.f32.mrf.mxu0
    %v833 = vadd.f32 %v664, %v832
    %v834 = vpop.f32.mrf.mxu0
    %v835 = vadd.f32 %v666, %v834
    %836 = vmatmul.bf16.gmra.mxu0 %v530
    %v837 = vpop.f32.mrf.mxu0
    %v838 = vadd.f32 %v669, %v837
    %v839 = vpop.f32.mrf.mxu0
    %v840 = vadd.f32 %v671, %v839
    %841 = vmatmul.bf16.gmra.mxu0 %v533
    %v842 = vpop.f32.mrf.mxu0
    %v843 = vadd.f32 %v674, %v842
    %v844 = vpop.f32.mrf.mxu0
    %v845 = vadd.f32 %v676, %v844
    %846 = vmatmul.bf16.gmra.mxu0 %v536
    %v847 = vpop.f32.mrf.mxu0
    %v848 = vadd.f32 %v679, %v847
    %v849 = vpop.f32.mrf.mxu0
    %v850 = vadd.f32 %v681, %v849
    %851 = vmatmul.bf16.gmra.mxu0 %v539
    %v852 = vpop.f32.mrf.mxu0
    %v853 = vadd.f32 %v684, %v852
    %v854 = vpop.f32.mrf.mxu0
    %v855 = vadd.f32 %v686, %v854
    %856 = vmatmul.bf16.gmra.mxu0 %v542
    %v857 = vpop.f32.mrf.mxu0
    %v858 = vadd.f32 %v689, %v857
    %v859 = vpop.f32.mrf.mxu0
    %v860 = vadd.f32 %v691, %v859
    %861 = vmatmul.bf16.gmra.mxu0 %v545
    %v862 = vpop.f32.mrf.mxu0
    %v863 = vadd.f32 %v694, %v862
    %v864 = vpop.f32.mrf.mxu0
    %v865 = vadd.f32 %v696, %v864
    %866 = vmatmul.bf16.gmra.mxu0 %v548
    %v867 = vpop.f32.mrf.mxu0
    %v868 = vadd.f32 %v699, %v867
    %v869 = vpop.f32.mrf.mxu0
    %v870 = vadd.f32 %v701, %v869
    %871 = vmatmul.bf16.gmra.mxu0 %v551
    %v872 = vpop.f32.mrf.mxu0
    %v873 = vadd.f32 %v704, %v872
    %v874 = vpop.f32.mrf.mxu0
    %v875 = vadd.f32 %v706, %v874
    %876 = vmatmul.bf16.gmra.mxu0 %v554
    %v877 = vpop.f32.mrf.mxu0
    %v878 = vadd.f32 %v709, %v877
    %v879 = vpop.f32.mrf.mxu0
    %v880 = vadd.f32 %v711, %v879
    %881 = vmatmul.bf16.gmra.mxu0 %v557
    %v882 = vpop.f32.mrf.mxu0
    %v883 = vadd.f32 %v714, %v882
    %v884 = vpop.f32.mrf.mxu0
    %v885 = vadd.f32 %v716, %v884
    %886 = vmatmul.bf16.gmra.mxu0 %v560
    %v887 = vpop.f32.mrf.mxu0
    %v888 = vadd.f32 %v719, %v887
    %v889 = vpop.f32.mrf.mxu0
    %v890 = vadd.f32 %v721, %v889
    %891 = vmatmul.bf16.gmra.mxu0 %v563
    %v892 = vpop.f32.mrf.mxu0
    %v893 = vadd.f32 %v724, %v892
    %v894 = vpop.f32.mrf.mxu0
    %v895 = vadd.f32 %v726, %v894
    %896 = vmatmul.bf16.gmra.mxu0 %v566
    %v897 = vpop.f32.mrf.mxu0
    %v898 = vadd.f32 %v729, %v897
    %v899 = vpop.f32.mrf.mxu0
    %v900 = vadd.f32 %v731, %v899
    %901 = vmatmul.bf16.gmra.mxu0 %v569
    %v902 = vpop.f32.mrf.mxu0
    %v903 = vadd.f32 %v734, %v902
    %v904 = vpop.f32.mrf.mxu0
    %v905 = vadd.f32 %v736, %v904
    %906 = vmatmul.bf16.gmra.mxu0 %v572
    %v907 = vpop.f32.mrf.mxu0
    %v908 = vadd.f32 %v739, %v907
    %v909 = vpop.f32.mrf.mxu0
    %v910 = vadd.f32 %v741, %v909
    %911 = vdwg.mxu0
    %v912 = vmax.f32 %v753, 0.0
    %v913 = vmax.f32 %v755, 0.0
    %v914 = vmax.f32 %v758, 0.0
    %v915 = vmax.f32 %v760, 0.0
    %v916 = vmax.f32 %v763, 0.0
    %v917 = vmax.f32 %v765, 0.0
    %v918 = vmax.f32 %v768, 0.0
    %v919 = vmax.f32 %v770, 0.0
    %v920 = vmax.f32 %v773, 0.0
    %v921 = vmax.f32 %v775, 0.0
    %v922 = vmax.f32 %v778, 0.0
    %v923 = vmax.f32 %v780, 0.0
    %v924 = vmax.f32 %v783, 0.0
    %v925 = vmax.f32 %v785, 0.0
    %v926 = vmax.f32 %v788, 0.0
    %v927 = vmax.f32 %v790, 0.0
    %v928 = vmax.f32 %v793, 0.0
    %v929 = vmax.f32 %v795, 0.0
    %v930 = vmax.f32 %v798, 0.0
    %v931 = vmax.f32 %v800, 0.0
    %v932 = vmax.f32 %v803, 0.0
    %v933 = vmax.f32 %v805, 0.0
    %v934 = vmax.f32 %v808, 0.0
    %v935 = vmax.f32 %v810, 0.0
    %v936 = vmax.f32 %v813, 0.0
    %v937 = vmax.f32 %v815, 0.0
    %v938 = vmax.f32 %v818, 0.0
    %v939 = vmax.f32 %v820, 0.0
    %v940 = vmax.f32 %v823, 0.0
    %v941 = vmax.f32 %v825, 0.0
    %v942 = vmax.f32 %v828, 0.0
    %v943 = vmax.f32 %v830, 0.0
    %v944 = vmax.f32 %v833, 0.0
    %v945 = vmax.f32 %v835, 0.0
    %v946 = vmax.f32 %v838, 0.0
    %v947 = vmax.f32 %v840, 0.0
    %v948 = vmax.f32 %v843, 0.0
    %v949 = vmax.f32 %v845, 0.0
    %v950 = vmax.f32 %v848, 0.0
    %v951 = vmax.f32 %v850, 0.0
    %v952 = vmax.f32 %v853, 0.0
    %v953 = vmax.f32 %v855, 0.0
    %v954 = vmax.f32 %v858, 0.0
    %v955 = vmax.f32 %v860, 0.0
    %v956 = vmax.f32 %v863, 0.0
    %v957 = vmax.f32 %v865, 0.0
    %v958 = vmax.f32 %v868, 0.0
    %v959 = vmax.f32 %v870, 0.0
    %v960 = vmax.f32 %v873, 0.0
    %v961 = vmax.f32 %v875, 0.0
    %v962 = vmax.f32 %v878, 0.0
    %v963 = vmax.f32 %v880, 0.0
    %v964 = vmax.f32 %v883, 0.0
    %v965 = vmax.f32 %v885, 0.0
    %v966 = vmax.f32 %v888, 0.0
    %v967 = vmax.f32 %v890, 0.0
    %v968 = vmax.f32 %v893, 0.0
    %v969 = vmax.f32 %v895, 0.0
    %v970 = vmax.f32 %v898, 0.0
    %v971 = vmax.f32 %v900, 0.0
    %v972 = vmax.f32 %v903, 0.0
    %v973 = vmax.f32 %v905, 0.0
    %v974 = vmax.f32 %v908, 0.0
    %v975 = vmax.f32 %v910, 0.0
    %v976 = vpack.c.bf16 %v913, %v912
    %v977 = vpack.c.bf16 %v915, %v914
    %v978 = vpack.c.bf16 %v917, %v916
    %v979 = vpack.c.bf16 %v919, %v918
    %v980 = vpack.c.bf16 %v921, %v920
    %v981 = vpack.c.bf16 %v923, %v922
    %v982 = vpack.c.bf16 %v925, %v924
    %v983 = vpack.c.bf16 %v927, %v926
    %v984 = vpack.c.bf16 %v929, %v928
    %v985 = vpack.c.bf16 %v931, %v930
    %v986 = vpack.c.bf16 %v933, %v932
    %v987 = vpack.c.bf16 %v935, %v934
    %v988 = vpack.c.bf16 %v937, %v936
    %v989 = vpack.c.bf16 %v939, %v938
    %v990 = vpack.c.bf16 %v941, %v940
    %v991 = vpack.c.bf16 %v943, %v942
    %v992 = vpack.c.bf16 %v945, %v944
    %v993 = vpack.c.bf16 %v947, %v946
    %v994 = vpack.c.bf16 %v949, %v948
    %v995 = vpack.c.bf16 %v951, %v950
    %v996 = vpack.c.bf16 %v953, %v952
    %v997 = vpack.c.bf16 %v955, %v954
    %v998 = vpack.c.bf16 %v957, %v956
    %v999 = vpack.c.bf16 %v959, %v958
    %v1000 = vpack.c.bf16 %v961, %v960
    %v1001 = vpack.c.bf16 %v963, %v962
    %v1002 = vpack.c.bf16 %v965, %v964
    %v1003 = vpack.c.bf16 %v967, %v966
    %v1004 = vpack.c.bf16 %v969, %v968
    %v1005 = vpack.c.bf16 %v971, %v970
    %v1006 = vpack.c.bf16 %v973, %v972
    %v1007 = vpack.c.bf16 %v975, %v974
    %v1008 = vld [vmem:[%s5] sm:$0xf]
    %v1009 = vld [vmem:[%s5 + $0x4] sm:$0xf]
    %v1010 = vld [vmem:[%s5 + $0x8] sm:$0xf]
    %v1011 = vld [vmem:[%s5 + $0xc] sm:$0xf]
    %v1012 = vld [vmem:[%s5 + $0x10] sm:$0xf]
    %v1013 = vld [vmem:[%s5 + $0x14] sm:$0xf]
    %v1014 = vld [vmem:[%s5 + $0x18] sm:$0xf]
    %v1015 = vld [vmem:[%s5 + $0x1c] sm:$0xf]
    %v1016 = vld [vmem:[%s5 + $0x20] sm:$0xf]
    %v1017 = vld [vmem:[%s5 + $0x24] sm:$0xf]
    %v1018 = vld [vmem:[%s5 + $0x28] sm:$0xf]
    %v1019 = vld [vmem:[%s5 + $0x2c] sm:$0xf]
    %v1020 = vld [vmem:[%s5 + $0x30] sm:$0xf]
    %v1021 = vld [vmem:[%s5 + $0x34] sm:$0xf]
    %v1022 = vld [vmem:[%s5 + $0x38] sm:$0xf]
    %v1023 = vld [vmem:[%s5 + $0x3c] sm:$0xf]
    %v1024 = vld [vmem:[%s6] sm:$0x1]
    %v1026 = vperm.slane %v1024, 0
    %v1044 = vunpack.c.l.b16 %v1008
    %v1045 = vunpack.c.l.b16 %v1009
    %v1046 = vunpack.c.l.b16 %v1010
    %v1047 = vunpack.c.l.b16 %v1011
    %v1048 = vunpack.c.l.b16 %v1012
    %v1049 = vunpack.c.l.b16 %v1013
    %v1050 = vunpack.c.l.b16 %v1014
    %v1051 = vunpack.c.l.b16 %v1015
    %v1052 = vunpack.c.l.b16 %v1016
    %v1053 = vunpack.c.l.b16 %v1017
    %v1054 = vunpack.c.l.b16 %v1018
    %v1055 = vunpack.c.l.b16 %v1019
    %v1056 = vunpack.c.l.b16 %v1020
    %v1057 = vunpack.c.l.b16 %v1021
    %v1058 = vunpack.c.l.b16 %v1022
    %v1059 = vunpack.c.l.b16 %v1023
    %v1060 = vpack.c.b16 %v1045, %v1044
    %v1061 = vpack.c.b16 %v1047, %v1046
    %v1062 = vpack.c.b16 %v1049, %v1048
    %v1063 = vpack.c.b16 %v1051, %v1050
    %v1064 = vpack.c.b16 %v1053, %v1052
    %v1065 = vpack.c.b16 %v1055, %v1054
    %v1066 = vpack.c.b16 %v1057, %v1056
    %v1067 = vpack.c.b16 %v1059, %v1058
    %1076 = vmatpush.bf16.msra.mxu0 %v1067
    %1077 = vmatpush.bf16.msra.mxu0 %v1066
    %1078 = vmatpush.bf16.msra.mxu0 %v1065
    %1079 = vmatpush.bf16.msra.mxu0 %v1064
    %1080 = vmatpush.bf16.msra.mxu0 %v1063
    %1081 = vmatpush.bf16.msra.mxu0 %v1062
    %1082 = vmatpush.bf16.msra.mxu0 %v1061
    %1083 = vmatpush.bf16.msra.mxu0 %v1060
    %1084 = vmatmul.bf16.gmra.mxu0 %v976
    %v1085 = vpop.f32.mrf.mxu0
    %v1086 = vadd.f32 %v1026, %v1085
    %v1087 = vpop.f32.mrf.mxu0
    %v1088 = vadd.f32 %v1026, %v1087
    %1089 = vmatmul.bf16.gmra.mxu0 %v977
    %v1090 = vpop.f32.mrf.mxu0
    %v1091 = vadd.f32 %v1026, %v1090
    %v1092 = vpop.f32.mrf.mxu0
    %v1093 = vadd.f32 %v1026, %v1092
    %1094 = vmatmul.bf16.gmra.mxu0 %v978
    %v1095 = vpop.f32.mrf.mxu0
    %v1096 = vadd.f32 %v1026, %v1095
    %v1097 = vpop.f32.mrf.mxu0
    %v1098 = vadd.f32 %v1026, %v1097
    %1099 = vmatmul.bf16.gmra.mxu0 %v979
    %v1100 = vpop.f32.mrf.mxu0
    %v1101 = vadd.f32 %v1026, %v1100
    %v1102 = vpop.f32.mrf.mxu0
    %v1103 = vadd.f32 %v1026, %v1102
    %1104 = vmatmul.bf16.gmra.mxu0 %v980
    %v1105 = vpop.f32.mrf.mxu0
    %v1106 = vadd.f32 %v1026, %v1105
    %v1107 = vpop.f32.mrf.mxu0
    %v1108 = vadd.f32 %v1026, %v1107
    %1109 = vmatmul.bf16.gmra.mxu0 %v981
    %v1110 = vpop.f32.mrf.mxu0
    %v1111 = vadd.f32 %v1026, %v1110
    %v1112 = vpop.f32.mrf.mxu0
    %v1113 = vadd.f32 %v1026, %v1112
    %1114 = vmatmul.bf16.gmra.mxu0 %v982
    %v1115 = vpop.f32.mrf.mxu0
    %v1116 = vadd.f32 %v1026, %v1115
    %v1117 = vpop.f32.mrf.mxu0
    %v1118 = vadd.f32 %v1026, %v1117
    %1119 = vmatmul.bf16.gmra.mxu0 %v983
    %v1120 = vpop.f32.mrf.mxu0
    %v1121 = vadd.f32 %v1026, %v1120
    %v1122 = vpop.f32.mrf.mxu0
    %v1123 = vadd.f32 %v1026, %v1122
    %1124 = vmatmul.bf16.gmra.mxu0 %v984
    %v1125 = vpop.f32.mrf.mxu0
    %v1126 = vadd.f32 %v1026, %v1125
    %v1127 = vpop.f32.mrf.mxu0
    %v1128 = vadd.f32 %v1026, %v1127
    %1129 = vmatmul.bf16.gmra.mxu0 %v985
    %v1130 = vpop.f32.mrf.mxu0
    %v1131 = vadd.f32 %v1026, %v1130
    %v1132 = vpop.f32.mrf.mxu0
    %v1133 = vadd.f32 %v1026, %v1132
    %1134 = vmatmul.bf16.gmra.mxu0 %v986
    %v1135 = vpop.f32.mrf.mxu0
    %v1136 = vadd.f32 %v1026, %v1135
    %v1137 = vpop.f32.mrf.mxu0
    %v1138 = vadd.f32 %v1026, %v1137
    %1139 = vmatmul.bf16.gmra.mxu0 %v987
    %v1140 = vpop.f32.mrf.mxu0
    %v1141 = vadd.f32 %v1026, %v1140
    %v1142 = vpop.f32.mrf.mxu0
    %v1143 = vadd.f32 %v1026, %v1142
    %1144 = vmatmul.bf16.gmra.mxu0 %v988
    %v1145 = vpop.f32.mrf.mxu0
    %v1146 = vadd.f32 %v1026, %v1145
    %v1147 = vpop.f32.mrf.mxu0
    %v1148 = vadd.f32 %v1026, %v1147
    %1149 = vmatmul.bf16.gmra.mxu0 %v989
    %v1150 = vpop.f32.mrf.mxu0
    %v1151 = vadd.f32 %v1026, %v1150
    %v1152 = vpop.f32.mrf.mxu0
    %v1153 = vadd.f32 %v1026, %v1152
    %1154 = vmatmul.bf16.gmra.mxu0 %v990
    %v1155 = vpop.f32.mrf.mxu0
    %v1156 = vadd.f32 %v1026, %v1155
    %v1157 = vpop.f32.mrf.mxu0
    %v1158 = vadd.f32 %v1026, %v1157
    %1159 = vmatmul.bf16.gmra.mxu0 %v991
    %v1160 = vpop.f32.mrf.mxu0
    %v1161 = vadd.f32 %v1026, %v1160
    %v1162 = vpop.f32.mrf.mxu0
    %v1163 = vadd.f32 %v1026, %v1162
    %1164 = vmatmul.bf16.gmra.mxu0 %v992
    %v1165 = vpop.f32.mrf.mxu0
    %v1166 = vadd.f32 %v1026, %v1165
    %v1167 = vpop.f32.mrf.mxu0
    %v1168 = vadd.f32 %v1026, %v1167
    %1169 = vmatmul.bf16.gmra.mxu0 %v993
    %v1170 = vpop.f32.mrf.mxu0
    %v1171 = vadd.f32 %v1026, %v1170
    %v1172 = vpop.f32.mrf.mxu0
    %v1173 = vadd.f32 %v1026, %v1172
    %1174 = vmatmul.bf16.gmra.mxu0 %v994
    %v1175 = vpop.f32.mrf.mxu0
    %v1176 = vadd.f32 %v1026, %v1175
    %v1177 = vpop.f32.mrf.mxu0
    %v1178 = vadd.f32 %v1026, %v1177
    %1179 = vmatmul.bf16.gmra.mxu0 %v995
    %v1180 = vpop.f32.mrf.mxu0
    %v1181 = vadd.f32 %v1026, %v1180
    %v1182 = vpop.f32.mrf.mxu0
    %v1183 = vadd.f32 %v1026, %v1182
    %1184 = vmatmul.bf16.gmra.mxu0 %v996
    %v1185 = vpop.f32.mrf.mxu0
    %v1186 = vadd.f32 %v1026, %v1185
    %v1187 = vpop.f32.mrf.mxu0
    %v1188 = vadd.f32 %v1026, %v1187
    %1189 = vmatmul.bf16.gmra.mxu0 %v997
    %v1190 = vpop.f32.mrf.mxu0
    %v1191 = vadd.f32 %v1026, %v1190
    %v1192 = vpop.f32.mrf.mxu0
    %v1193 = vadd.f32 %v1026, %v1192
    %1194 = vmatmul.bf16.gmra.mxu0 %v998
    %v1195 = vpop.f32.mrf.mxu0
    %v1196 = vadd.f32 %v1026, %v1195
    %v1197 = vpop.f32.mrf.mxu0
    %v1198 = vadd.f32 %v1026, %v1197
    %1199 = vmatmul.bf16.gmra.mxu0 %v999
    %v1200 = vpop.f32.mrf.mxu0
    %v1201 = vadd.f32 %v1026, %v1200
    %v1202 = vpop.f32.mrf.mxu0
    %v1203 = vadd.f32 %v1026, %v1202
    %1204 = vmatmul.bf16.gmra.mxu0 %v1000
    %v1205 = vpop.f32.mrf.mxu0
    %v1206 = vadd.f32 %v1026, %v1205
    %v1207 = vpop.f32.mrf.mxu0
    %v1208 = vadd.f32 %v1026, %v1207
    %1209 = vmatmul.bf16.gmra.mxu0 %v1001
    %v1210 = vpop.f32.mrf.mxu0
    %v1211 = vadd.f32 %v1026, %v1210
    %v1212 = vpop.f32.mrf.mxu0
    %v1213 = vadd.f32 %v1026, %v1212
    %1214 = vmatmul.bf16.gmra.mxu0 %v1002
    %v1215 = vpop.f32.mrf.mxu0
    %v1216 = vadd.f32 %v1026, %v1215
    %v1217 = vpop.f32.mrf.mxu0
    %v1218 = vadd.f32 %v1026, %v1217
    %1219 = vmatmul.bf16.gmra.mxu0 %v1003
    %v1220 = vpop.f32.mrf.mxu0
    %v1221 = vadd.f32 %v1026, %v1220
    %v1222 = vpop.f32.mrf.mxu0
    %v1223 = vadd.f32 %v1026, %v1222
    %1224 = vmatmul.bf16.gmra.mxu0 %v1004
    %v1225 = vpop.f32.mrf.mxu0
    %v1226 = vadd.f32 %v1026, %v1225
    %v1227 = vpop.f32.mrf.mxu0
    %v1228 = vadd.f32 %v1026, %v1227
    %1229 = vmatmul.bf16.gmra.mxu0 %v1005
    %v1230 = vpop.f32.mrf.mxu0
    %v1231 = vadd.f32 %v1026, %v1230
    %v1232 = vpop.f32.mrf.mxu0
    %v1233 = vadd.f32 %v1026, %v1232
    %1234 = vmatmul.bf16.gmra.mxu0 %v1006
    %v1235 = vpop.f32.mrf.mxu0
    %v1236 = vadd.f32 %v1026, %v1235
    %v1237 = vpop.f32.mrf.mxu0
    %v1238 = vadd.f32 %v1026, %v1237
    %1239 = vmatmul.bf16.gmra.mxu0 %v1007
    %v1240 = vpop.f32.mrf.mxu0
    %v1241 = vadd.f32 %v1026, %v1240
    %v1242 = vpop.f32.mrf.mxu0
    %v1243 = vadd.f32 %v1026, %v1242
    %1244 = vdwg.mxu0
    %v1245 = vmax.f32 %v1086, 0.0
    %v1246 = vmax.f32 %v1088, 0.0
    %v1247 = vmax.f32 %v1091, 0.0
    %v1248 = vmax.f32 %v1093, 0.0
    %v1249 = vmax.f32 %v1096, 0.0
    %v1250 = vmax.f32 %v1098, 0.0
    %v1251 = vmax.f32 %v1101, 0.0
    %v1252 = vmax.f32 %v1103, 0.0
    %v1253 = vmax.f32 %v1106, 0.0
    %v1254 = vmax.f32 %v1108, 0.0
    %v1255 = vmax.f32 %v1111, 0.0
    %v1256 = vmax.f32 %v1113, 0.0
    %v1257 = vmax.f32 %v1116, 0.0
    %v1258 = vmax.f32 %v1118, 0.0
    %v1259 = vmax.f32 %v1121, 0.0
    %v1260 = vmax.f32 %v1123, 0.0
    %v1261 = vmax.f32 %v1126, 0.0
    %v1262 = vmax.f32 %v1128, 0.0
    %v1263 = vmax.f32 %v1131, 0.0
    %v1264 = vmax.f32 %v1133, 0.0
    %v1265 = vmax.f32 %v1136, 0.0
    %v1266 = vmax.f32 %v1138, 0.0
    %v1267 = vmax.f32 %v1141, 0.0
    %v1268 = vmax.f32 %v1143, 0.0
    %v1269 = vmax.f32 %v1146, 0.0
    %v1270 = vmax.f32 %v1148, 0.0
    %v1271 = vmax.f32 %v1151, 0.0
    %v1272 = vmax.f32 %v1153, 0.0
    %v1273 = vmax.f32 %v1156, 0.0
    %v1274 = vmax.f32 %v1158, 0.0
    %v1275 = vmax.f32 %v1161, 0.0
    %v1276 = vmax.f32 %v1163, 0.0
    %v1277 = vmax.f32 %v1166, 0.0
    %v1278 = vmax.f32 %v1168, 0.0
    %v1279 = vmax.f32 %v1171, 0.0
    %v1280 = vmax.f32 %v1173, 0.0
    %v1281 = vmax.f32 %v1176, 0.0
    %v1282 = vmax.f32 %v1178, 0.0
    %v1283 = vmax.f32 %v1181, 0.0
    %v1284 = vmax.f32 %v1183, 0.0
    %v1285 = vmax.f32 %v1186, 0.0
    %v1286 = vmax.f32 %v1188, 0.0
    %v1287 = vmax.f32 %v1191, 0.0
    %v1288 = vmax.f32 %v1193, 0.0
    %v1289 = vmax.f32 %v1196, 0.0
    %v1290 = vmax.f32 %v1198, 0.0
    %v1291 = vmax.f32 %v1201, 0.0
    %v1292 = vmax.f32 %v1203, 0.0
    %v1293 = vmax.f32 %v1206, 0.0
    %v1294 = vmax.f32 %v1208, 0.0
    %v1295 = vmax.f32 %v1211, 0.0
    %v1296 = vmax.f32 %v1213, 0.0
    %v1297 = vmax.f32 %v1216, 0.0
    %v1298 = vmax.f32 %v1218, 0.0
    %v1299 = vmax.f32 %v1221, 0.0
    %v1300 = vmax.f32 %v1223, 0.0
    %v1301 = vmax.f32 %v1226, 0.0
    %v1302 = vmax.f32 %v1228, 0.0
    %v1303 = vmax.f32 %v1231, 0.0
    %v1304 = vmax.f32 %v1233, 0.0
    %v1305 = vmax.f32 %v1236, 0.0
    %v1306 = vmax.f32 %v1238, 0.0
    %v1307 = vmax.f32 %v1241, 0.0
    %v1308 = vmax.f32 %v1243, 0.0
    %v1309 = vadd.f32 %v1245, %v1246
    %v1310 = vadd.f32 %v1309, %v1247
    %v1311 = vadd.f32 %v1310, %v1248
    %v1312 = vadd.f32 %v1311, %v1249
    %v1313 = vadd.f32 %v1312, %v1250
    %v1314 = vadd.f32 %v1313, %v1251
    %v1315 = vadd.f32 %v1314, %v1252
    %v1316 = vadd.f32 %v1315, %v1253
    %v1317 = vadd.f32 %v1316, %v1254
    %v1318 = vadd.f32 %v1317, %v1255
    %v1319 = vadd.f32 %v1318, %v1256
    %v1320 = vadd.f32 %v1319, %v1257
    %v1321 = vadd.f32 %v1320, %v1258
    %v1322 = vadd.f32 %v1321, %v1259
    %v1323 = vadd.f32 %v1322, %v1260
    %v1324 = vadd.f32 %v1323, %v1261
    %v1325 = vadd.f32 %v1324, %v1262
    %v1326 = vadd.f32 %v1325, %v1263
    %v1327 = vadd.f32 %v1326, %v1264
    %v1328 = vadd.f32 %v1327, %v1265
    %v1329 = vadd.f32 %v1328, %v1266
    %v1330 = vadd.f32 %v1329, %v1267
    %v1331 = vadd.f32 %v1330, %v1268
    %v1332 = vadd.f32 %v1331, %v1269
    %v1333 = vadd.f32 %v1332, %v1270
    %v1334 = vadd.f32 %v1333, %v1271
    %v1335 = vadd.f32 %v1334, %v1272
    %v1336 = vadd.f32 %v1335, %v1273
    %v1337 = vadd.f32 %v1336, %v1274
    %v1338 = vadd.f32 %v1337, %v1275
    %v1339 = vadd.f32 %v1338, %v1276
    %v1340 = vrot.slane %v1339, 4
    %v1341 = vadd.f32 %v1339, %v1340
    %v1342 = vrot.slane %v1341, 2
    %v1343 = vadd.f32 %v1341, %v1342
    %v1344 = vrot.slane %v1343, 1
    %v1345 = vadd.f32 %v1343, %v1344
    %v1346 = vadd.f32 %v1277, %v1278
    %v1347 = vadd.f32 %v1346, %v1279
    %v1348 = vadd.f32 %v1347, %v1280
    %v1349 = vadd.f32 %v1348, %v1281
    %v1350 = vadd.f32 %v1349, %v1282
    %v1351 = vadd.f32 %v1350, %v1283
    %v1352 = vadd.f32 %v1351, %v1284
    %v1353 = vadd.f32 %v1352, %v1285
    %v1354 = vadd.f32 %v1353, %v1286
    %v1355 = vadd.f32 %v1354, %v1287
    %v1356 = vadd.f32 %v1355, %v1288
    %v1357 = vadd.f32 %v1356, %v1289
    %v1358 = vadd.f32 %v1357, %v1290
    %v1359 = vadd.f32 %v1358, %v1291
    %v1360 = vadd.f32 %v1359, %v1292
    %v1361 = vadd.f32 %v1360, %v1293
    %v1362 = vadd.f32 %v1361, %v1294
    %v1363 = vadd.f32 %v1362, %v1295
    %v1364 = vadd.f32 %v1363, %v1296
    %v1365 = vadd.f32 %v1364, %v1297
    %v1366 = vadd.f32 %v1365, %v1298
    %v1367 = vadd.f32 %v1366, %v1299
    %v1368 = vadd.f32 %v1367, %v1300
    %v1369 = vadd.f32 %v1368, %v1301
    %v1370 = vadd.f32 %v1369, %v1302
    %v1371 = vadd.f32 %v1370, %v1303
    %v1372 = vadd.f32 %v1371, %v1304
    %v1373 = vadd.f32 %v1372, %v1305
    %v1374 = vadd.f32 %v1373, %v1306
    %v1375 = vadd.f32 %v1374, %v1307
    %v1376 = vadd.f32 %v1375, %v1308
    %v1377 = vrot.slane %v1376, 4
    %v1378 = vadd.f32 %v1376, %v1377
    %v1379 = vrot.slane %v1378, 2
    %v1380 = vadd.f32 %v1378, %v1379
    %v1381 = vrot.slane %v1380, 1
    %v1382 = vadd.f32 %v1380, %v1381
    %v1383 = vrcp.pop 256.0
    %v1384 = vmul.f32 256.0, %v1383
    %v1385 = vsub.f32 1.0, %v1384
    %v1386 = vmul.f32 %v1383, %v1385
    %v1387 = vadd.f32 %v1383, %v1386
    %vm1388 = vweird.f32 %v1383
    %v1389 = vsel %vm1388, %v1383, %v1387
    %v1390 = vmul.f32 %v1345, %v1389
    %v1391 = vmul.f32 %v1382, %v1389
    %v1392 = vpack.c.bf16 %v1390, %v1390
    %v1393 = vpack.c.bf16 %v1391, %v1391
    %v1394 = vld [vmem:[%s7] sm:$0xff]
    %v1395 = vld [vmem:[%s7 + $0x8] sm:$0xff]
    %v1396 = vld [vmem:[%s7 + $0x10] sm:$0xff]
    %v1397 = vld [vmem:[%s7 + $0x18] sm:$0xff]
    %v1398 = vld [vmem:[%s7 + $0x20] sm:$0xff]
    %v1399 = vld [vmem:[%s7 + $0x28] sm:$0xff]
    %v1400 = vld [vmem:[%s7 + $0x30] sm:$0xff]
    %v1401 = vld [vmem:[%s7 + $0x38] sm:$0xff]
    %v1402 = vld [vmem:[%s7 + $0x40] sm:$0xff]
    %v1403 = vld [vmem:[%s7 + $0x48] sm:$0xff]
    %v1404 = vld [vmem:[%s7 + $0x50] sm:$0xff]
    %v1405 = vld [vmem:[%s7 + $0x58] sm:$0xff]
    %v1406 = vld [vmem:[%s7 + $0x60] sm:$0xff]
    %v1407 = vld [vmem:[%s7 + $0x68] sm:$0xff]
    %v1408 = vld [vmem:[%s7 + $0x70] sm:$0xff]
    %v1409 = vld [vmem:[%s7 + $0x78] sm:$0xff]
    %v1410 = vld [vmem:[%s7 + $0x80] sm:$0xff]
    %v1411 = vld [vmem:[%s7 + $0x88] sm:$0xff]
    %v1412 = vld [vmem:[%s7 + $0x90] sm:$0xff]
    %v1413 = vld [vmem:[%s7 + $0x98] sm:$0xff]
    %v1414 = vld [vmem:[%s7 + $0xa0] sm:$0xff]
    %v1415 = vld [vmem:[%s7 + $0xa8] sm:$0xff]
    %v1416 = vld [vmem:[%s7 + $0xb0] sm:$0xff]
    %v1417 = vld [vmem:[%s7 + $0xb8] sm:$0xff]
    %v1418 = vld [vmem:[%s7 + $0xc0] sm:$0xff]
    %v1419 = vld [vmem:[%s7 + $0xc8] sm:$0xff]
    %v1420 = vld [vmem:[%s7 + $0xd0] sm:$0xff]
    %v1421 = vld [vmem:[%s7 + $0xd8] sm:$0xff]
    %v1422 = vld [vmem:[%s7 + $0xe0] sm:$0xff]
    %v1423 = vld [vmem:[%s7 + $0xe8] sm:$0xff]
    %v1424 = vld [vmem:[%s7 + $0xf0] sm:$0xff]
    %v1425 = vld [vmem:[%s7 + $0xf8] sm:$0xff]
    %v1426 = vld [vmem:[%s8] sm:$0xf]
    %v1428 = vperm.slane %v1426, 0
    %v1429 = vperm.slane %v1426, 1
    %v1430 = vperm.slane %v1426, 2
    %v1431 = vperm.slane %v1426, 3
    %v1438 = vunpack.c.l.b16 %v1392
    %v1439 = vunpack.c.l.b16 %v1393
    %vm1440 = vcmask 1041409
    %v1441 = vsel %vm1440, %v1439, %v1438
    %v1442 = vpack.c.b16 %v1441, %v1441
    %v1476 = vunpack.c.l.b16 %v1394
    %v1477 = vunpack.c.h.b16 %v1394
    %v1478 = vunpack.c.l.b16 %v1395
    %v1479 = vunpack.c.h.b16 %v1395
    %v1480 = vunpack.c.l.b16 %v1396
    %v1481 = vunpack.c.h.b16 %v1396
    %v1482 = vunpack.c.l.b16 %v1397
    %v1483 = vunpack.c.h.b16 %v1397
    %v1484 = vunpack.c.l.b16 %v1398
    %v1485 = vunpack.c.h.b16 %v1398
    %v1486 = vunpack.c.l.b16 %v1399
    %v1487 = vunpack.c.h.b16 %v1399
    %v1488 = vunpack.c.l.b16 %v1400
    %v1489 = vunpack.c.h.b16 %v1400
    %v1490 = vunpack.c.l.b16 %v1401
    %v1491 = vunpack.c.h.b16 %v1401
    %v1492 = vunpack.c.l.b16 %v1402
    %v1493 = vunpack.c.h.b16 %v1402
    %v1494 = vunpack.c.l.b16 %v1403
    %v1495 = vunpack.c.h.b16 %v1403
    %v1496 = vunpack.c.l.b16 %v1404
    %v1497 = vunpack.c.h.b16 %v1404
    %v1498 = vunpack.c.l.b16 %v1405
    %v1499 = vunpack.c.h.b16 %v1405
    %v1500 = vunpack.c.l.b16 %v1406
    %v1501 = vunpack.c.h.b16 %v1406
    %v1502 = vunpack.c.l.b16 %v1407
    %v1503 = vunpack.c.h.b16 %v1407
    %v1504 = vunpack.c.l.b16 %v1408
    %v1505 = vunpack.c.h.b16 %v1408
    %v1506 = vunpack.c.l.b16 %v1409
    %v1507 = vunpack.c.h.b16 %v1409
    %v1508 = vunpack.c.l.b16 %v1410
    %v1509 = vunpack.c.h.b16 %v1410
    %v1510 = vunpack.c.l.b16 %v1411
    %v1511 = vunpack.c.h.b16 %v1411
    %v1512 = vunpack.c.l.b16 %v1412
    %v1513 = vunpack.c.h.b16 %v1412
    %v1514 = vunpack.c.l.b16 %v1413
    %v1515 = vunpack.c.h.b16 %v1413
    %v1516 = vunpack.c.l.b16 %v1414
    %v1517 = vunpack.c.h.b16 %v1414
    %v1518 = vunpack.c.l.b16 %v1415
    %v1519 = vunpack.c.h.b16 %v1415
    %v1520 = vunpack.c.l.b16 %v1416
    %v1521 = vunpack.c.h.b16 %v1416
    %v1522 = vunpack.c.l.b16 %v1417
    %v1523 = vunpack.c.h.b16 %v1417
    %v1524 = vunpack.c.l.b16 %v1418
    %v1525 = vunpack.c.h.b16 %v1418
    %v1526 = vunpack.c.l.b16 %v1419
    %v1527 = vunpack.c.h.b16 %v1419
    %v1528 = vunpack.c.l.b16 %v1420
    %v1529 = vunpack.c.h.b16 %v1420
    %v1530 = vunpack.c.l.b16 %v1421
    %v1531 = vunpack.c.h.b16 %v1421
    %v1532 = vunpack.c.l.b16 %v1422
    %v1533 = vunpack.c.h.b16 %v1422
    %v1534 = vunpack.c.l.b16 %v1423
    %v1535 = vunpack.c.h.b16 %v1423
    %v1536 = vunpack.c.l.b16 %v1424
    %v1537 = vunpack.c.h.b16 %v1424
    %v1538 = vunpack.c.l.b16 %v1425
    %v1539 = vunpack.c.h.b16 %v1425
    %v1540 = vpack.c.b16 %v1480, %v1476
    %v1541 = vpack.c.b16 %v1481, %v1477
    %v1542 = vpack.c.b16 %v1482, %v1478
    %v1543 = vpack.c.b16 %v1483, %v1479
    %v1544 = vpack.c.b16 %v1488, %v1484
    %v1545 = vpack.c.b16 %v1489, %v1485
    %v1546 = vpack.c.b16 %v1490, %v1486
    %v1547 = vpack.c.b16 %v1491, %v1487
    %v1548 = vpack.c.b16 %v1496, %v1492
    %v1549 = vpack.c.b16 %v1497, %v1493
    %v1550 = vpack.c.b16 %v1498, %v1494
    %v1551 = vpack.c.b16 %v1499, %v1495
    %v1552 = vpack.c.b16 %v1504, %v1500
    %v1553 = vpack.c.b16 %v1505, %v1501
    %v1554 = vpack.c.b16 %v1506, %v1502
    %v1555 = vpack.c.b16 %v1507, %v1503
    %v1556 = vpack.c.b16 %v1512, %v1508
    %v1557 = vpack.c.b16 %v1513, %v1509
    %v1558 = vpack.c.b16 %v1514, %v1510
    %v1559 = vpack.c.b16 %v1515, %v1511
    %v1560 = vpack.c.b16 %v1520, %v1516
    %v1561 = vpack.c.b16 %v1521, %v1517
    %v1562 = vpack.c.b16 %v1522, %v1518
    %v1563 = vpack.c.b16 %v1523, %v1519
    %v1564 = vpack.c.b16 %v1528, %v1524
    %v1565 = vpack.c.b16 %v1529, %v1525
    %v1566 = vpack.c.b16 %v1530, %v1526
    %v1567 = vpack.c.b16 %v1531, %v1527
    %v1568 = vpack.c.b16 %v1536, %v1532
    %v1569 = vpack.c.b16 %v1537, %v1533
    %v1570 = vpack.c.b16 %v1538, %v1534
    %v1571 = vpack.c.b16 %v1539, %v1535
    %1604 = vmatpush.bf16.msra.mxu0 %v1568
    %1605 = vmatpush.bf16.msra.mxu0 %v1564
    %1606 = vmatpush.bf16.msra.mxu0 %v1560
    %1607 = vmatpush.bf16.msra.mxu0 %v1556
    %1608 = vmatpush.bf16.msra.mxu0 %v1552
    %1609 = vmatpush.bf16.msra.mxu0 %v1548
    %1610 = vmatpush.bf16.msra.mxu0 %v1544
    %1611 = vmatpush.bf16.msra.mxu0 %v1540
    %1612 = vmatmul.bf16.gmra.mxu0 %v1442
    %v1613 = vpop.f32.mrf.mxu0
    %v1614 = vadd.f32 %v1428, %v1613
    %v1615 = vpop.f32.mrf.mxu0
    %1616 = vdwg.mxu0
    %1617 = vmatpush.bf16.msra.mxu0 %v1569
    %1618 = vmatpush.bf16.msra.mxu0 %v1565
    %1619 = vmatpush.bf16.msra.mxu0 %v1561
    %1620 = vmatpush.bf16.msra.mxu0 %v1557
    %1621 = vmatpush.bf16.msra.mxu0 %v1553
    %1622 = vmatpush.bf16.msra.mxu0 %v1549
    %1623 = vmatpush.bf16.msra.mxu0 %v1545
    %1624 = vmatpush.bf16.msra.mxu0 %v1541
    %1625 = vmatmul.bf16.gmra.mxu0 %v1442
    %v1626 = vpop.f32.mrf.mxu0
    %v1627 = vadd.f32 %v1429, %v1626
    %v1628 = vpop.f32.mrf.mxu0
    %1629 = vdwg.mxu0
    %1630 = vmatpush.bf16.msra.mxu0 %v1570
    %1631 = vmatpush.bf16.msra.mxu0 %v1566
    %1632 = vmatpush.bf16.msra.mxu0 %v1562
    %1633 = vmatpush.bf16.msra.mxu0 %v1558
    %1634 = vmatpush.bf16.msra.mxu0 %v1554
    %1635 = vmatpush.bf16.msra.mxu0 %v1550
    %1636 = vmatpush.bf16.msra.mxu0 %v1546
    %1637 = vmatpush.bf16.msra.mxu0 %v1542
    %1638 = vmatmul.bf16.gmra.mxu0 %v1442
    %v1639 = vpop.f32.mrf.mxu0
    %v1640 = vadd.f32 %v1430, %v1639
    %v1641 = vpop.f32.mrf.mxu0
    %1642 = vdwg.mxu0
    %1643 = vmatpush.bf16.msra.mxu0 %v1571
    %1644 = vmatpush.bf16.msra.mxu0 %v1567
    %1645 = vmatpush.bf16.msra.mxu0 %v1563
    %1646 = vmatpush.bf16.msra.mxu0 %v1559
    %1647 = vmatpush.bf16.msra.mxu0 %v1555
    %1648 = vmatpush.bf16.msra.mxu0 %v1551
    %1649 = vmatpush.bf16.msra.mxu0 %v1547
    %1650 = vmatpush.bf16.msra.mxu0 %v1543
    %1651 = vmatmul.bf16.gmra.mxu0 %v1442
    %v1652 = vpop.f32.mrf.mxu0
    %v1653 = vadd.f32 %v1431, %v1652
    %v1654 = vpop.f32.mrf.mxu0
    %1655 = vdwg.mxu0
    %v1656 = vmax.f32 %v1614, 0.0
    %v1657 = vmax.f32 %v1627, 0.0
    %v1658 = vmax.f32 %v1640, 0.0
    %v1659 = vmax.f32 %v1653, 0.0
    %v1664 = vrot.slane %v1657, 6
    %v1665 = vrot.slane %v1658, 4
    %v1666 = vrot.slane %v1659, 2
    %vm1667 = vcmask 1041408
    %v1668 = vsel %vm1667, %v1656, %v1664
    %vm1669 = vcmask 1045508
    %v1670 = vsel %vm1669, %v1665, %v1666
    %vm1671 = vcmask 1043456
    %v1672 = vsel %vm1671, %v1668, %v1670
    %1674 = vst [vmem:[#allocation2] sm:$0xff] %v1672
    %v1675 = vld [vmem:[%s1] sm:$0xf]
    %v1676 = vld [vmem:[%s1 + $0x4] sm:$0xf]
    %v1677 = vld [vmem:[%s2] sm:$0xf]
    %v1678 = vld [vmem:[%s2 + $0x4] sm:$0xf]
    %v1679 = vld [vmem:[%s9] sm:$0xf]
    %v1680 = vld [vmem:[%s9 + $0x4] sm:$0xf]
    %v1681 = vld [vmem:[%s9 + $0x8] sm:$0xf]
    %v1682 = vld [vmem:[%s9 + $0xc] sm:$0xf]
    %v1685 = vunpack.c.l.b16 %v1677
    %v1686 = vunpack.c.l.b16 %v1678
    %v1687 = vpack.c.b16 %v1686, %v1685
    %v1692 = vunpack.c.l.b16 %v1679
    %v1693 = vunpack.c.l.b16 %v1680
    %v1694 = vunpack.c.l.b16 %v1681
    %v1695 = vunpack.c.l.b16 %v1682
    %v1696 = vpack.c.b16 %v1693, %v1692
    %v1697 = vpack.c.b16 %v1695, %v1694
    %vm1700 = vcmask 261120
    %v1702 = vsel %vm1700, %v1687, 0
    %1704 = vmatpush.bf16.msra.mxu0 0
    %1705 = vmatpush.bf16.msra.mxu0 0
    %1706 = vmatpush.bf16.msra.mxu0 0
    %1707 = vmatpush.bf16.msra.mxu0 0
    %1708 = vmatpush.bf16.msra.mxu0 0
    %1709 = vmatpush.bf16.msra.mxu0 0
    %1710 = vmatpush.bf16.msra.mxu0 %v1697
    %1711 = vmatpush.bf16.msra.mxu0 %v1696
    %1712 = vmatmul.bf16.gmra.mxu0 %v1702
    %v1713 = vpop.f32.mrf.mxu0
    %v1714 = vadd.f32 0.0, %v1713
    %v1715 = vpop.f32.mrf.mxu0
    %v1716 = vadd.f32 0.0, %v1715
    %1717 = vdwg.mxu0
    %v1718 = vpack.c.bf16 %v1714, %v1714
    %v1719 = vpack.c.bf16 %v1716, %v1716
    %vm1720 = vcmask 64512
    %v1722 = vsel %vm1720, %v1675, 0
    %v1725 = vsel %vm1671, %v1718, 0
    %1727 = vmatpush.bf16.msra.mxu0 0
    %1728 = vmatpush.bf16.msra.mxu0 0
    %1729 = vmatpush.bf16.msra.mxu0 0
    %1730 = vmatpush.bf16.msra.mxu0 0
    %1731 = vmatpush.bf16.msra.mxu0 0
    %1732 = vmatpush.bf16.msra.mxu0 0
    %1733 = vmatpush.bf16.msra.mxu0 0
    %1734 = vmatpush.bf16.msra.mxu0 %v1725
    %1735 = vmatmul.bf16.gmra.mxu0 %v1722
    %v1736 = vpop.f32.mrf.mxu0
    %v1737 = vadd.f32 0.0, %v1736
    %v1738 = vpop.f32.mrf.mxu0
    %1739 = vdwg.mxu0
    %v1741 = vsel %vm1720, %v1676, 0
    %v1744 = vsel %vm1671, %v1719, 0
    %1746 = vmatpush.bf16.msra.mxu0 0
    %1747 = vmatpush.bf16.msra.mxu0 0
    %1748 = vmatpush.bf16.msra.mxu0 0
    %1749 = vmatpush.bf16.msra.mxu0 0
    %1750 = vmatpush.bf16.msra.mxu0 0
    %1751 = vmatpush.bf16.msra.mxu0 0
    %1752 = vmatpush.bf16.msra.mxu0 0
    %1753 = vmatpush.bf16.msra.mxu0 %v1744
    %1754 = vmatmul.bf16.gmra.mxu0 %v1741
    %v1755 = vpop.f32.mrf.mxu0
    %v1756 = vadd.f32 0.0, %v1755
    %v1757 = vpop.f32.mrf.mxu0
    %1758 = vdwg.mxu0
    %v1759 = vmax.f32 %v1737, 0.0
    %v1760 = vmax.f32 %v1756, 0.0
    %v1761 = vpack.c.bf16 %v1760, %v1759
    %v1762 = vld [vmem:[%s10] sm:$0xff]
    %v1763 = vld [vmem:[%s10 + $0x8] sm:$0xff]
    %v1764 = vld [vmem:[%s10 + $0x10] sm:$0xff]
    %v1765 = vld [vmem:[%s10 + $0x18] sm:$0xff]
    %v1766 = vld [vmem:[%s10 + $0x20] sm:$0xff]
    %v1767 = vld [vmem:[%s10 + $0x28] sm:$0xff]
    %v1768 = vld [vmem:[%s10 + $0x30] sm:$0xff]
    %v1769 = vld [vmem:[%s10 + $0x38] sm:$0xff]
    %v1770 = vld [vmem:[%s10 + $0x40] sm:$0xff]
    %v1771 = vld [vmem:[%s10 + $0x48] sm:$0xff]
    %v1772 = vld [vmem:[%s10 + $0x50] sm:$0xff]
    %v1773 = vld [vmem:[%s10 + $0x58] sm:$0xff]
    %v1774 = vld [vmem:[%s10 + $0x60] sm:$0xff]
    %v1775 = vld [vmem:[%s10 + $0x68] sm:$0xff]
    %v1776 = vld [vmem:[%s10 + $0x70] sm:$0xff]
    %v1777 = vld [vmem:[%s10 + $0x78] sm:$0xff]
    %v1794 = vunpack.c.l.b16 %v1762
    %v1795 = vunpack.c.h.b16 %v1762
    %v1796 = vunpack.c.l.b16 %v1763
    %v1797 = vunpack.c.h.b16 %v1763
    %v1798 = vunpack.c.l.b16 %v1764
    %v1799 = vunpack.c.h.b16 %v1764
    %v1800 = vunpack.c.l.b16 %v1765
    %v1801 = vunpack.c.h.b16 %v1765
    %v1802 = vunpack.c.l.b16 %v1766
    %v1803 = vunpack.c.h.b16 %v1766
    %v1804 = vunpack.c.l.b16 %v1767
    %v1805 = vunpack.c.h.b16 %v1767
    %v1806 = vunpack.c.l.b16 %v1768
    %v1807 = vunpack.c.h.b16 %v1768
    %v1808 = vunpack.c.l.b16 %v1769
    %v1809 = vunpack.c.h.b16 %v1769
    %v1810 = vunpack.c.l.b16 %v1770
    %v1811 = vunpack.c.h.b16 %v1770
    %v1812 = vunpack.c.l.b16 %v1771
    %v1813 = vunpack.c.h.b16 %v1771
    %v1814 = vunpack.c.l.b16 %v1772
    %v1815 = vunpack.c.h.b16 %v1772
    %v1816 = vunpack.c.l.b16 %v1773
    %v1817 = vunpack.c.h.b16 %v1773
    %v1818 = vunpack.c.l.b16 %v1774
    %v1819 = vunpack.c.h.b16 %v1774
    %v1820 = vunpack.c.l.b16 %v1775
    %v1821 = vunpack.c.h.b16 %v1775
    %v1822 = vunpack.c.l.b16 %v1776
    %v1823 = vunpack.c.h.b16 %v1776
    %v1824 = vunpack.c.l.b16 %v1777
    %v1825 = vunpack.c.h.b16 %v1777
    %v1826 = vpack.c.b16 %v1796, %v1794
    %v1827 = vpack.c.b16 %v1797, %v1795
    %v1828 = vpack.c.b16 %v1800, %v1798
    %v1829 = vpack.c.b16 %v1801, %v1799
    %v1830 = vpack.c.b16 %v1804, %v1802
    %v1831 = vpack.c.b16 %v1805, %v1803
    %v1832 = vpack.c.b16 %v1808, %v1806
    %v1833 = vpack.c.b16 %v1809, %v1807
    %v1834 = vpack.c.b16 %v1812, %v1810
    %v1835 = vpack.c.b16 %v1813, %v1811
    %v1836 = vpack.c.b16 %v1816, %v1814
    %v1837 = vpack.c.b16 %v1817, %v1815
    %v1838 = vpack.c.b16 %v1820, %v1818
    %v1839 = vpack.c.b16 %v1821, %v1819
    %v1840 = vpack.c.b16 %v1824, %v1822
    %v1841 = vpack.c.b16 %v1825, %v1823
    %1858 = vmatpush.bf16.msra.mxu0 %v1840
    %1859 = vmatpush.bf16.msra.mxu0 %v1838
    %1860 = vmatpush.bf16.msra.mxu0 %v1836
    %1861 = vmatpush.bf16.msra.mxu0 %v1834
    %1862 = vmatpush.bf16.msra.mxu0 %v1832
    %1863 = vmatpush.bf16.msra.mxu0 %v1830
    %1864 = vmatpush.bf16.msra.mxu0 %v1828
    %1865 = vmatpush.bf16.msra.mxu0 %v1826
    %1866 = vmatmul.bf16.gmra.mxu0 %v1761
    %v1867 = vpop.f32.mrf.mxu0
    %v1868 = vadd.f32 0.0, %v1867
    %v1869 = vpop.f32.mrf.mxu0
    %v1870 = vadd.f32 0.0, %v1869
    %1871 = vdwg.mxu0
    %1872 = vmatpush.bf16.msra.mxu0 %v1841
    %1873 = vmatpush.bf16.msra.mxu0 %v1839
    %1874 = vmatpush.bf16.msra.mxu0 %v1837
    %1875 = vmatpush.bf16.msra.mxu0 %v1835
    %1876 = vmatpush.bf16.msra.mxu0 %v1833
    %1877 = vmatpush.bf16.msra.mxu0 %v1831
    %1878 = vmatpush.bf16.msra.mxu0 %v1829
    %1879 = vmatpush.bf16.msra.mxu0 %v1827
    %1880 = vmatmul.bf16.gmra.mxu0 %v1761
    %v1881 = vpop.f32.mrf.mxu0
    %v1882 = vadd.f32 0.0, %v1881
    %v1883 = vpop.f32.mrf.mxu0
    %v1884 = vadd.f32 0.0, %v1883
    %1885 = vdwg.mxu0
    %v1886 = vpack.c.bf16 %v1882, %v1868
    %v1887 = vpack.c.bf16 %v1884, %v1870
    %v1889 = vunpack.c.l.b16 %v1886
    %v1890 = vunpack.c.h.b16 %v1886
    %v1891 = vpack.c.b16 %v1889, %v1889
    %v1892 = vpack.c.b16 %v1890, %v1890
    %v1894 = vsel %vm1671, %v1891, 0
    %v1897 = vsel %vm1671, %v1892, 0
    %1899 = vmatpush.bf16.msra.mxu0 0
    %1900 = vmatpush.bf16.msra.mxu0 0
    %1901 = vmatpush.bf16.msra.mxu0 0
    %1902 = vmatpush.bf16.msra.mxu0 0
    %1903 = vmatpush.bf16.msra.mxu0 0
    %1904 = vmatpush.bf16.msra.mxu0 0
    %1905 = vmatpush.bf16.msra.mxu0 0
    %1906 = vmatpush.bf16.msra.mxu0 %v1894
    %1907 = vmatmul.bf16.gmra.mxu0 %v1722
    %v1908 = vpop.f32.mrf.mxu0
    %v1909 = vadd.f32 0.0, %v1908
    %v1910 = vpop.f32.mrf.mxu0
    %1911 = vdwg.mxu0
    %1912 = vmatpush.bf16.msra.mxu0 0
    %1913 = vmatpush.bf16.msra.mxu0 0
    %1914 = vmatpush.bf16.msra.mxu0 0
    %1915 = vmatpush.bf16.msra.mxu0 0
    %1916 = vmatpush.bf16.msra.mxu0 0
    %1917 = vmatpush.bf16.msra.mxu0 0
    %1918 = vmatpush.bf16.msra.mxu0 0
    %1919 = vmatpush.bf16.msra.mxu0 %v1897
    %1920 = vmatmul.bf16.gmra.mxu0 %v1722
    %v1921 = vpop.f32.mrf.mxu0
    %v1922 = vadd.f32 0.0, %v1921
    %v1923 = vpop.f32.mrf.mxu0
    %1924 = vdwg.mxu0
    %v1926 = vunpack.c.l.b16 %v1887
    %v1927 = vunpack.c.h.b16 %v1887
    %v1928 = vpack.c.b16 %v1926, %v1926
    %v1929 = vpack.c.b16 %v1927, %v1927
    %v1931 = vsel %vm1671, %v1928, 0
    %v1934 = vsel %vm1671, %v1929, 0
    %1936 = vmatpush.bf16.msra.mxu0 0
    %1937 = vmatpush.bf16.msra.mxu0 0
    %1938 = vmatpush.bf16.msra.mxu0 0
    %1939 = vmatpush.bf16.msra.mxu0 0
    %1940 = vmatpush.bf16.msra.mxu0 0
    %1941 = vmatpush.bf16.msra.mxu0 0
    %1942 = vmatpush.bf16.msra.mxu0 0
    %1943 = vmatpush.bf16.msra.mxu0 %v1931
    %1944 = vmatmul.bf16.gmra.mxu0 %v1741
    %v1945 = vpop.f32.mrf.mxu0
    %v1946 = vadd.f32 0.0, %v1945
    %v1947 = vpop.f32.mrf.mxu0
    %1948 = vdwg.mxu0
    %1949 = vmatpush.bf16.msra.mxu0 0
    %1950 = vmatpush.bf16.msra.mxu0 0
    %1951 = vmatpush.bf16.msra.mxu0 0
    %1952 = vmatpush.bf16.msra.mxu0 0
    %1953 = vmatpush.bf16.msra.mxu0 0
    %1954 = vmatpush.bf16.msra.mxu0 0
    %1955 = vmatpush.bf16.msra.mxu0 0
    %1956 = vmatpush.bf16.msra.mxu0 %v1934
    %1957 = vmatmul.bf16.gmra.mxu0 %v1741
    %v1958 = vpop.f32.mrf.mxu0
    %v1959 = vadd.f32 0.0, %v1958
    %v1960 = vpop.f32.mrf.mxu0
    %1961 = vdwg.mxu0
    %v1962 = vmax.f32 %v1909, 0.0
    %v1963 = vmax.f32 %v1922, 0.0
    %v1964 = vmax.f32 %v1946, 0.0
    %v1965 = vmax.f32 %v1959, 0.0
    %v1966 = vrot.slane %v1962, 4
    %v1967 = vadd.f32 %v1962, %v1966
    %v1968 = vrot.slane %v1967, 2
    %v1969 = vadd.f32 %v1967, %v1968
    %v1970 = vrot.slane %v1969, 1
    %v1971 = vadd.f32 %v1969, %v1970
    %v1972 = vrot.slane %v1963, 4
    %v1973 = vadd.f32 %v1963, %v1972
    %v1974 = vrot.slane %v1973, 2
    %v1975 = vadd.f32 %v1973, %v1974
    %v1976 = vrot.slane %v1975, 1
    %v1977 = vadd.f32 %v1975, %v1976
    %v1978 = vrot.slane %v1964, 4
    %v1979 = vadd.f32 %v1964, %v1978
    %v1980 = vrot.slane %v1979, 2
    %v1981 = vadd.f32 %v1979, %v1980
    %v1982 = vrot.slane %v1981, 1
    %v1983 = vadd.f32 %v1981, %v1982
    %v1984 = vrot.slane %v1965, 4
    %v1985 = vadd.f32 %v1965, %v1984
    %v1986 = vrot.slane %v1985, 2
    %v1987 = vadd.f32 %v1985, %v1986
    %v1988 = vrot.slane %v1987, 1
    %v1989 = vadd.f32 %v1987, %v1988
    %v1990 = vrcp.pop 8.0
    %v1991 = vmul.f32 8.0, %v1990
    %v1992 = vsub.f32 1.0, %v1991
    %v1993 = vmul.f32 %v1990, %v1992
    %v1994 = vadd.f32 %v1990, %v1993
    %vm1995 = vweird.f32 %v1990
    %v1996 = vsel %vm1995, %v1990, %v1994
    %v1997 = vmul.f32 %v1971, %v1996
    %v1998 = vmul.f32 %v1977, %v1996
    %v1999 = vmul.f32 %v1983, %v1996
    %v2000 = vmul.f32 %v1989, %v1996
    %v2001 = vpack.c.bf16 %v1997, %v1997
    %v2002 = vpack.c.bf16 %v1998, %v1998
    %v2003 = vpack.c.bf16 %v1999, %v1999
    %v2004 = vpack.c.bf16 %v2000, %v2000
    %v2005 = vld [vmem:[%s11] sm:$0xff]
    %v2006 = vld [vmem:[%s11 + $0x8] sm:$0xff]
    %v2007 = vld [vmem:[%s11 + $0x10] sm:$0xff]
    %v2008 = vld [vmem:[%s11 + $0x18] sm:$0xff]
    %v2009 = vld [vmem:[%s11 + $0x20] sm:$0xff]
    %v2010 = vld [vmem:[%s11 + $0x28] sm:$0xff]
    %v2011 = vld [vmem:[%s11 + $0x30] sm:$0xff]
    %v2012 = vld [vmem:[%s11 + $0x38] sm:$0xff]
    %v2013 = vld [vmem:[%s11 + $0x40] sm:$0xff]
    %v2014 = vld [vmem:[%s11 + $0x48] sm:$0xff]
    %v2015 = vld [vmem:[%s11 + $0x50] sm:$0xff]
    %v2016 = vld [vmem:[%s11 + $0x58] sm:$0xff]
    %v2017 = vld [vmem:[%s11 + $0x60] sm:$0xff]
    %v2018 = vld [vmem:[%s11 + $0x68] sm:$0xff]
    %v2019 = vld [vmem:[%s11 + $0x70] sm:$0xff]
    %v2020 = vld [vmem:[%s11 + $0x78] sm:$0xff]
    %v2021 = vld [vmem:[%s11 + $0x80] sm:$0xff]
    %v2022 = vld [vmem:[%s11 + $0x88] sm:$0xff]
    %v2023 = vld [vmem:[%s11 + $0x90] sm:$0xff]
    %v2024 = vld [vmem:[%s11 + $0x98] sm:$0xff]
    %v2025 = vld [vmem:[%s11 + $0xa0] sm:$0xff]
    %v2026 = vld [vmem:[%s11 + $0xa8] sm:$0xff]
    %v2027 = vld [vmem:[%s11 + $0xb0] sm:$0xff]
    %v2028 = vld [vmem:[%s11 + $0xb8] sm:$0xff]
    %v2029 = vld [vmem:[%s11 + $0xc0] sm:$0xff]
    %v2030 = vld [vmem:[%s11 + $0xc8] sm:$0xff]
    %v2031 = vld [vmem:[%s11 + $0xd0] sm:$0xff]
    %v2032 = vld [vmem:[%s11 + $0xd8] sm:$0xff]
    %v2033 = vld [vmem:[%s11 + $0xe0] sm:$0xff]
    %v2034 = vld [vmem:[%s11 + $0xe8] sm:$0xff]
    %v2035 = vld [vmem:[%s11 + $0xf0] sm:$0xff]
    %v2036 = vld [vmem:[%s11 + $0xf8] sm:$0xff]
    %v2037 = vld [vmem:[%s11 + $0x100] sm:$0xff]
    %v2038 = vld [vmem:[%s11 + $0x108] sm:$0xff]
    %v2039 = vld [vmem:[%s11 + $0x110] sm:$0xff]
    %v2040 = vld [vmem:[%s11 + $0x118] sm:$0xff]
    %v2041 = vld [vmem:[%s11 + $0x120] sm:$0xff]
    %v2042 = vld [vmem:[%s11 + $0x128] sm:$0xff]
    %v2043 = vld [vmem:[%s11 + $0x130] sm:$0xff]
    %v2044 = vld [vmem:[%s11 + $0x138] sm:$0xff]
    %v2045 = vld [vmem:[%s11 + $0x140] sm:$0xff]
    %v2046 = vld [vmem:[%s11 + $0x148] sm:$0xff]
    %v2047 = vld [vmem:[%s11 + $0x150] sm:$0xff]
    %v2048 = vld [vmem:[%s11 + $0x158] sm:$0xff]
    %v2049 = vld [vmem:[%s11 + $0x160] sm:$0xff]
    %v2050 = vld [vmem:[%s11 + $0x168] sm:$0xff]
    %v2051 = vld [vmem:[%s11 + $0x170] sm:$0xff]
    %v2052 = vld [vmem:[%s11 + $0x178] sm:$0xff]
    %v2053 = vld [vmem:[%s11 + $0x180] sm:$0xff]
    %v2054 = vld [vmem:[%s11 + $0x188] sm:$0xff]
    %v2055 = vld [vmem:[%s11 + $0x190] sm:$0xff]
    %v2056 = vld [vmem:[%s11 + $0x198] sm:$0xff]
    %v2057 = vld [vmem:[%s11 + $0x1a0] sm:$0xff]
    %v2058 = vld [vmem:[%s11 + $0x1a8] sm:$0xff]
    %v2059 = vld [vmem:[%s11 + $0x1b0] sm:$0xff]
    %v2060 = vld [vmem:[%s11 + $0x1b8] sm:$0xff]
    %v2061 = vld [vmem:[%s11 + $0x1c0] sm:$0xff]
    %v2062 = vld [vmem:[%s11 + $0x1c8] sm:$0xff]
    %v2063 = vld [vmem:[%s11 + $0x1d0] sm:$0xff]
    %v2064 = vld [vmem:[%s11 + $0x1d8] sm:$0xff]
    %v2065 = vld [vmem:[%s11 + $0x1e0] sm:$0xff]
    %v2066 = vld [vmem:[%s11 + $0x1e8] sm:$0xff]
    %v2067 = vld [vmem:[%s11 + $0x1f0] sm:$0xff]
    %v2068 = vld [vmem:[%s11 + $0x1f8] sm:$0xff]
    %v2069 = vld [vmem:[%s12] sm:$0xf]
    %v2071 = vperm.slane %v2069, 0
    %v2072 = vperm.slane %v2069, 1
    %v2073 = vperm.slane %v2069, 2
    %v2074 = vperm.slane %v2069, 3
    %v2083 = vunpack.c.l.b16 %v2001
    %v2084 = vunpack.c.l.b16 %v2002
    %v2085 = vunpack.c.l.b16 %v2003
    %v2086 = vunpack.c.l.b16 %v2004
    %v2087 = vsel %vm1440, %v2085, %v2083
    %v2088 = vsel %vm1440, %v2086, %v2084
    %v2089 = vpack.c.b16 %v2087, %v2087
    %v2090 = vpack.c.b16 %v2088, %v2088
    %v2157 = vunpack.c.l.b16 %v2005
    %v2158 = vunpack.c.h.b16 %v2005
    %v2159 = vunpack.c.l.b16 %v2006
    %v2160 = vunpack.c.h.b16 %v2006
    %v2161 = vunpack.c.l.b16 %v2007
    %v2162 = vunpack.c.h.b16 %v2007
    %v2163 = vunpack.c.l.b16 %v2008
    %v2164 = vunpack.c.h.b16 %v2008
    %v2165 = vunpack.c.l.b16 %v2009
    %v2166 = vunpack.c.h.b16 %v2009
    %v2167 = vunpack.c.l.b16 %v2010
    %v2168 = vunpack.c.h.b16 %v2010
    %v2169 = vunpack.c.l.b16 %v2011
    %v2170 = vunpack.c.h.b16 %v2011
    %v2171 = vunpack.c.l.b16 %v2012
    %v2172 = vunpack.c.h.b16 %v2012
    %v2173 = vunpack.c.l.b16 %v2013
    %v2174 = vunpack.c.h.b16 %v2013
    %v2175 = vunpack.c.l.b16 %v2014
    %v2176 = vunpack.c.h.b16 %v2014
    %v2177 = vunpack.c.l.b16 %v2015
    %v2178 = vunpack.c.h.b16 %v2015
    %v2179 = vunpack.c.l.b16 %v2016
    %v2180 = vunpack.c.h.b16 %v2016
    %v2181 = vunpack.c.l.b16 %v2017
    %v2182 = vunpack.c.h.b16 %v2017
    %v2183 = vunpack.c.l.b16 %v2018
    %v2184 = vunpack.c.h.b16 %v2018
    %v2185 = vunpack.c.l.b16 %v2019
    %v2186 = vunpack.c.h.b16 %v2019
    %v2187 = vunpack.c.l.b16 %v2020
    %v2188 = vunpack.c.h.b16 %v2020
    %v2189 = vunpack.c.l.b16 %v2021
    %v2190 = vunpack.c.h.b16 %v2021
    %v2191 = vunpack.c.l.b16 %v2022
    %v2192 = vunpack.c.h.b16 %v2022
    %v2193 = vunpack.c.l.b16 %v2023
    %v2194 = vunpack.c.h.b16 %v2023
    %v2195 = vunpack.c.l.b16 %v2024
    %v2196 = vunpack.c.h.b16 %v2024
    %v2197 = vunpack.c.l.b16 %v2025
    %v2198 = vunpack.c.h.b16 %v2025
    %v2199 = vunpack.c.l.b16 %v2026
    %v2200 = vunpack.c.h.b16 %v2026
    %v2201 = vunpack.c.l.b16 %v2027
    %v2202 = vunpack.c.h.b16 %v2027
    %v2203 = vunpack.c.l.b16 %v2028
    %v2204 = vunpack.c.h.b16 %v2028
    %v2205 = vunpack.c.l.b16 %v2029
    %v2206 = vunpack.c.h.b16 %v2029
    %v2207 = vunpack.c.l.b16 %v2030
    %v2208 = vunpack.c.h.b16 %v2030
    %v2209 = vunpack.c.l.b16 %v2031
    %v2210 = vunpack.c.h.b16 %v2031
    %v2211 = vunpack.c.l.b16 %v2032
    %v2212 = vunpack.c.h.b16 %v2032
    %v2213 = vunpack.c.l.b16 %v2033
    %v2214 = vunpack.c.h.b16 %v2033
    %v2215 = vunpack.c.l.b16 %v2034
    %v2216 = vunpack.c.h.b16 %v2034
    %v2217 = vunpack.c.l.b16 %v2035
    %v2218 = vunpack.c.h.b16 %v2035
    %v2219 = vunpack.c.l.b16 %v2036
    %v2220 = vunpack.c.h.b16 %v2036
    %v2221 = vunpack.c.l.b16 %v2037
    %v2222 = vunpack.c.h.b16 %v2037
    %v2223 = vunpack.c.l.b16 %v2038
    %v2224 = vunpack.c.h.b16 %v2038
    %v2225 = vunpack.c.l.b16 %v2039
    %v2226 = vunpack.c.h.b16 %v2039
    %v2227 = vunpack.c.l.b16 %v2040
    %v2228 = vunpack.c.h.b16 %v2040
    %v2229 = vunpack.c.l.b16 %v2041
    %v2230 = vunpack.c.h.b16 %v2041
    %v2231 = vunpack.c.l.b16 %v2042
    %v2232 = vunpack.c.h.b16 %v2042
    %v2233 = vunpack.c.l.b16 %v2043
    %v2234 = vunpack.c.h.b16 %v2043
    %v2235 = vunpack.c.l.b16 %v2044
    %v2236 = vunpack.c.h.b16 %v2044
    %v2237 = vunpack.c.l.b16 %v2045
    %v2238 = vunpack.c.h.b16 %v2045
    %v2239 = vunpack.c.l.b16 %v2046
    %v2240 = vunpack.c.h.b16 %v2046
    %v2241 = vunpack.c.l.b16 %v2047
    %v2242 = vunpack.c.h.b16 %v2047
    %v2243 = vunpack.c.l.b16 %v2048
    %v2244 = vunpack.c.h.b16 %v2048
    %v2245 = vunpack.c.l.b16 %v2049
    %v2246 = vunpack.c.h.b16 %v2049
    %v2247 = vunpack.c.l.b16 %v2050
    %v2248 = vunpack.c.h.b16 %v2050
    %v2249 = vunpack.c.l.b16 %v2051
    %v2250 = vunpack.c.h.b16 %v2051
    %v2251 = vunpack.c.l.b16 %v2052
    %v2252 = vunpack.c.h.b16 %v2052
    %v2253 = vunpack.c.l.b16 %v2053
    %v2254 = vunpack.c.h.b16 %v2053
    %v2255 = vunpack.c.l.b16 %v2054
    %v2256 = vunpack.c.h.b16 %v2054
    %v2257 = vunpack.c.l.b16 %v2055
    %v2258 = vunpack.c.h.b16 %v2055
    %v2259 = vunpack.c.l.b16 %v2056
    %v2260 = vunpack.c.h.b16 %v2056
    %v2261 = vunpack.c.l.b16 %v2057
    %v2262 = vunpack.c.h.b16 %v2057
    %v2263 = vunpack.c.l.b16 %v2058
    %v2264 = vunpack.c.h.b16 %v2058
    %v2265 = vunpack.c.l.b16 %v2059
    %v2266 = vunpack.c.h.b16 %v2059
    %v2267 = vunpack.c.l.b16 %v2060
    %v2268 = vunpack.c.h.b16 %v2060
    %v2269 = vunpack.c.l.b16 %v2061
    %v2270 = vunpack.c.h.b16 %v2061
    %v2271 = vunpack.c.l.b16 %v2062
    %v2272 = vunpack.c.h.b16 %v2062
    %v2273 = vunpack.c.l.b16 %v2063
    %v2274 = vunpack.c.h.b16 %v2063
    %v2275 = vunpack.c.l.b16 %v2064
    %v2276 = vunpack.c.h.b16 %v2064
    %v2277 = vunpack.c.l.b16 %v2065
    %v2278 = vunpack.c.h.b16 %v2065
    %v2279 = vunpack.c.l.b16 %v2066
    %v2280 = vunpack.c.h.b16 %v2066
    %v2281 = vunpack.c.l.b16 %v2067
    %v2282 = vunpack.c.h.b16 %v2067
    %v2283 = vunpack.c.l.b16 %v2068
    %v2284 = vunpack.c.h.b16 %v2068
    %v2285 = vpack.c.b16 %v2161, %v2157
    %v2286 = vpack.c.b16 %v2162, %v2158
    %v2287 = vpack.c.b16 %v2163, %v2159
    %v2288 = vpack.c.b16 %v2164, %v2160
    %v2289 = vpack.c.b16 %v2169, %v2165
    %v2290 = vpack.c.b16 %v2170, %v2166
    %v2291 = vpack.c.b16 %v2171, %v2167
    %v2292 = vpack.c.b16 %v2172, %v2168
    %v2293 = vpack.c.b16 %v2177, %v2173
    %v2294 = vpack.c.b16 %v2178, %v2174
    %v2295 = vpack.c.b16 %v2179, %v2175
    %v2296 = vpack.c.b16 %v2180, %v2176
    %v2297 = vpack.c.b16 %v2185, %v2181
    %v2298 = vpack.c.b16 %v2186, %v2182
    %v2299 = vpack.c.b16 %v2187, %v2183
    %v2300 = vpack.c.b16 %v2188, %v2184
    %v2301 = vpack.c.b16 %v2193, %v2189
    %v2302 = vpack.c.b16 %v2194, %v2190
    %v2303 = vpack.c.b16 %v2195, %v2191
    %v2304 = vpack.c.b16 %v2196, %v2192
    %v2305 = vpack.c.b16 %v2201, %v2197
    %v2306 = vpack.c.b16 %v2202, %v2198
    %v2307 = vpack.c.b16 %v2203, %v2199
    %v2308 = vpack.c.b16 %v2204, %v2200
    %v2309 = vpack.c.b16 %v2209, %v2205
    %v2310 = vpack.c.b16 %v2210, %v2206
    %v2311 = vpack.c.b16 %v2211, %v2207
    %v2312 = vpack.c.b16 %v2212, %v2208
    %v2313 = vpack.c.b16 %v2217, %v2213
    %v2314 = vpack.c.b16 %v2218, %v2214
    %v2315 = vpack.c.b16 %v2219, %v2215
    %v2316 = vpack.c.b16 %v2220, %v2216
    %v2317 = vpack.c.b16 %v2225, %v2221
    %v2318 = vpack.c.b16 %v2226, %v2222
    %v2319 = vpack.c.b16 %v2227, %v2223
    %v2320 = vpack.c.b16 %v2228, %v2224
    %v2321 = vpack.c.b16 %v2233, %v2229
    %v2322 = vpack.c.b16 %v2234, %v2230
    %v2323 = vpack.c.b16 %v2235, %v2231
    %v2324 = vpack.c.b16 %v2236, %v2232
    %v2325 = vpack.c.b16 %v2241, %v2237
    %v2326 = vpack.c.b16 %v2242, %v2238
    %v2327 = vpack.c.b16 %v2243, %v2239
    %v2328 = vpack.c.b16 %v2244, %v2240
    %v2329 = vpack.c.b16 %v2249, %v2245
    %v2330 = vpack.c.b16 %v2250, %v2246
    %v2331 = vpack.c.b16 %v2251, %v2247
    %v2332 = vpack.c.b16 %v2252, %v2248
    %v2333 = vpack.c.b16 %v2257, %v2253
    %v2334 = vpack.c.b16 %v2258, %v2254
    %v2335 = vpack.c.b16 %v2259, %v2255
    %v2336 = vpack.c.b16 %v2260, %v2256
    %v2337 = vpack.c.b16 %v2265, %v2261
    %v2338 = vpack.c.b16 %v2266, %v2262
    %v2339 = vpack.c.b16 %v2267, %v2263
    %v2340 = vpack.c.b16 %v2268, %v2264
    %v2341 = vpack.c.b16 %v2273, %v2269
    %v2342 = vpack.c.b16 %v2274, %v2270
    %v2343 = vpack.c.b16 %v2275, %v2271
    %v2344 = vpack.c.b16 %v2276, %v2272
    %v2345 = vpack.c.b16 %v2281, %v2277
    %v2346 = vpack.c.b16 %v2282, %v2278
    %v2347 = vpack.c.b16 %v2283, %v2279
    %v2348 = vpack.c.b16 %v2284, %v2280
    %2413 = vmatpush.bf16.msra.mxu0 %v2313
    %2414 = vmatpush.bf16.msra.mxu0 %v2309
    %2415 = vmatpush.bf16.msra.mxu0 %v2305
    %2416 = vmatpush.bf16.msra.mxu0 %v2301
    %2417 = vmatpush.bf16.msra.mxu0 %v2297
    %2418 = vmatpush.bf16.msra.mxu0 %v2293
    %2419 = vmatpush.bf16.msra.mxu0 %v2289
    %2420 = vmatpush.bf16.msra.mxu0 %v2285
    %2421 = vmatmul.bf16.gmra.mxu0 %v2089
    %v2422 = vpop.f32.mrf.mxu0
    %v2423 = vadd.f32 %v2071, %v2422
    %v2424 = vpop.f32.mrf.mxu0
    %2425 = vdwg.mxu0
    %2426 = vmatpush.bf16.msra.mxu0 %v2345
    %2427 = vmatpush.bf16.msra.mxu0 %v2341
    %2428 = vmatpush.bf16.msra.mxu0 %v2337
    %2429 = vmatpush.bf16.msra.mxu0 %v2333
    %2430 = vmatpush.bf16.msra.mxu0 %v2329
    %2431 = vmatpush.bf16.msra.mxu0 %v2325
    %2432 = vmatpush.bf16.msra.mxu0 %v2321
    %2433 = vmatpush.bf16.msra.mxu0 %v2317
    %2434 = vmatmul.bf16.gmra.mxu0 %v2090
    %v2435 = vpop.f32.mrf.mxu0
    %v2436 = vadd.f32 %v2423, %v2435
    %v2437 = vpop.f32.mrf.mxu0
    %2438 = vdwg.mxu0
    %2439 = vmatpush.bf16.msra.mxu0 %v2314
    %2440 = vmatpush.bf16.msra.mxu0 %v2310
    %2441 = vmatpush.bf16.msra.mxu0 %v2306
    %2442 = vmatpush.bf16.msra.mxu0 %v2302
    %2443 = vmatpush.bf16.msra.mxu0 %v2298
    %2444 = vmatpush.bf16.msra.mxu0 %v2294
    %2445 = vmatpush.bf16.msra.mxu0 %v2290
    %2446 = vmatpush.bf16.msra.mxu0 %v2286
    %2447 = vmatmul.bf16.gmra.mxu0 %v2089
    %v2448 = vpop.f32.mrf.mxu0
    %v2449 = vadd.f32 %v2072, %v2448
    %v2450 = vpop.f32.mrf.mxu0
    %2451 = vdwg.mxu0
    %2452 = vmatpush.bf16.msra.mxu0 %v2346
    %2453 = vmatpush.bf16.msra.mxu0 %v2342
    %2454 = vmatpush.bf16.msra.mxu0 %v2338
    %2455 = vmatpush.bf16.msra.mxu0 %v2334
    %2456 = vmatpush.bf16.msra.mxu0 %v2330
    %2457 = vmatpush.bf16.msra.mxu0 %v2326
    %2458 = vmatpush.bf16.msra.mxu0 %v2322
    %2459 = vmatpush.bf16.msra.mxu0 %v2318
    %2460 = vmatmul.bf16.gmra.mxu0 %v2090
    %v2461 = vpop.f32.mrf.mxu0
    %v2462 = vadd.f32 %v2449, %v2461
    %v2463 = vpop.f32.mrf.mxu0
    %2464 = vdwg.mxu0
    %2465 = vmatpush.bf16.msra.mxu0 %v2315
    %2466 = vmatpush.bf16.msra.mxu0 %v2311
    %2467 = vmatpush.bf16.msra.mxu0 %v2307
    %2468 = vmatpush.bf16.msra.mxu0 %v2303
    %2469 = vmatpush.bf16.msra.mxu0 %v2299
    %2470 = vmatpush.bf16.msra.mxu0 %v2295
    %2471 = vmatpush.bf16.msra.mxu0 %v2291
    %2472 = vmatpush.bf16.msra.mxu0 %v2287
    %2473 = vmatmul.bf16.gmra.mxu0 %v2089
    %v2474 = vpop.f32.mrf.mxu0
    %v2475 = vadd.f32 %v2073, %v2474
    %v2476 = vpop.f32.mrf.mxu0
    %2477 = vdwg.mxu0
    %2478 = vmatpush.bf16.msra.mxu0 %v2347
    %2479 = vmatpush.bf16.msra.mxu0 %v2343
    %2480 = vmatpush.bf16.msra.mxu0 %v2339
    %2481 = vmatpush.bf16.msra.mxu0 %v2335
    %2482 = vmatpush.bf16.msra.mxu0 %v2331
    %2483 = vmatpush.bf16.msra.mxu0 %v2327
    %2484 = vmatpush.bf16.msra.mxu0 %v2323
    %2485 = vmatpush.bf16.msra.mxu0 %v2319
    %2486 = vmatmul.bf16.gmra.mxu0 %v2090
    %v2487 = vpop.f32.mrf.mxu0
    %v2488 = vadd.f32 %v2475, %v2487
    %v2489 = vpop.f32.mrf.mxu0
    %2490 = vdwg.mxu0
    %2491 = vmatpush.bf16.msra.mxu0 %v2316
    %2492 = vmatpush.bf16.msra.mxu0 %v2312
    %2493 = vmatpush.bf16.msra.mxu0 %v2308
    %2494 = vmatpush.bf16.msra.mxu0 %v2304
    %2495 = vmatpush.bf16.msra.mxu0 %v2300
    %2496 = vmatpush.bf16.msra.mxu0 %v2296
    %2497 = vmatpush.bf16.msra.mxu0 %v2292
    %2498 = vmatpush.bf16.msra.mxu0 %v2288
    %2499 = vmatmul.bf16.gmra.mxu0 %v2089
    %v2500 = vpop.f32.mrf.mxu0
    %v2501 = vadd.f32 %v2074, %v2500
    %v2502 = vpop.f32.mrf.mxu0
    %2503 = vdwg.mxu0
    %2504 = vmatpush.bf16.msra.mxu0 %v2348
    %2505 = vmatpush.bf16.msra.mxu0 %v2344
    %2506 = vmatpush.bf16.msra.mxu0 %v2340
    %2507 = vmatpush.bf16.msra.mxu0 %v2336
    %2508 = vmatpush.bf16.msra.mxu0 %v2332
    %2509 = vmatpush.bf16.msra.mxu0 %v2328
    %2510 = vmatpush.bf16.msra.mxu0 %v2324
    %2511 = vmatpush.bf16.msra.mxu0 %v2320
    %2512 = vmatmul.bf16.gmra.mxu0 %v2090
    %v2513 = vpop.f32.mrf.mxu0
    %v2514 = vadd.f32 %v2501, %v2513
    %v2515 = vpop.f32.mrf.mxu0
    %2516 = vdwg.mxu0
    %v2517 = vmax.f32 %v2436, 0.0
    %v2518 = vmax.f32 %v2462, 0.0
    %v2519 = vmax.f32 %v2488, 0.0
    %v2520 = vmax.f32 %v2514, 0.0
    %v2525 = vrot.slane %v2518, 6
    %v2526 = vrot.slane %v2519, 4
    %v2527 = vrot.slane %v2520, 2
    %v2528 = vsel %vm1667, %v2517, %v2525
    %v2529 = vsel %vm1669, %v2526, %v2527
    %v2530 = vsel %vm1671, %v2528, %v2529
    %2532 = vst [vmem:[#allocation4] sm:$0xff] %v2530
    // Predicated region
    $region54: #{minamo_forward.1} parent=1 // pred_check
      _
    $region55: #{minamo_forward.1} parent=1 // pred_check_branch
      %2534 = sbr.rel (0) target = $region57
    $region56: #{minamo_forward.1} parent=1 // pred_region
      %2536 = vsyncadd [#allocation3], 0
      %s2538 = sshll.u32 [#allocation2], 4
      %s2539 = int_to_ptr.vmem [resolvable:$true] %s2538
      %s2540 = sshll.u32 %s13, 4
      %s2541 = int_to_ptr.hbm [resolvable:$true] %s2540
      %2543 = dma.vmem_to_hbm [thread:$0]  %s2539, 128, %s2541, [#allocation3]
    $region57: #{minamo_forward.1} parent=1 // pred_fallthru
      _
    // Predicated region
    $region58: #{minamo_forward.1} parent=1 // pred_check
      _
    $region59: #{minamo_forward.1} parent=1 // pred_check_branch
      %2545 = sbr.rel (0) target = $region61
    $region60: #{minamo_forward.1} parent=1 // pred_region
      %2547 = vsyncadd [#allocation5], 0
      %s2549 = sshll.u32 [#allocation4], 4
      %s2550 = int_to_ptr.vmem [resolvable:$true] %s2549
      %s2551 = sshll.u32 %s14, 4
      %s2552 = int_to_ptr.hbm [resolvable:$true] %s2551
      %2554 = dma.vmem_to_hbm [thread:$0]  %s2550, 128, %s2552, [#allocation5]
    $region61: #{minamo_forward.1} parent=1 // pred_fallthru
      _
    // Predicated region
    $region62: #{minamo_forward.1} parent=1 // pred_check
      _
    $region63: #{minamo_forward.1} parent=1 // pred_check_branch
      %2556 = sbr.rel (0) target = $region65
    $region64: #{minamo_forward.1} parent=1 // pred_region
      %2558 = dma.done [#allocation3], 128
    $region65: #{minamo_forward.1} parent=1 // pred_fallthru
      _
    // Predicated region
    $region66: #{minamo_forward.1} parent=1 // pred_check
      _
    $region67: #{minamo_forward.1} parent=1 // pred_check_branch
      %2560 = sbr.rel (0) target = $region69
    $region68: #{minamo_forward.1} parent=1 // pred_region
      %2562 = dma.done [#allocation5], 128
    $region69: #{minamo_forward.1} parent=1 // pred_fallthru
      _
    %2563 = vsyncpa [#allocation3], 1
    %2564 = vsyncpa [#allocation5], 1

</llo_original>
